<compile_context>
chip_gen: v6e
topology: v6e:2x2x1
jax: 0.10.0
libtpu: 0.0.40
codegen_flags: <defaults>
</compile_context>

<pallas_src>
import functools

import numpy as np
import jax
import jax.numpy as jnp
from jax import lax
from jax.experimental import pallas as pl
from jax.experimental.pallas import tpu as pltpu

_LANE = 128
_SUBLANE = 8


def _round_up(n, m):
    return ((n + m - 1) // m) * m


def _largest_divisor_leq(n, cap):
    for d in range(min(n, cap), 0, -1):
        if n % d == 0:
            return d
    return 1


# ----------------------------------------------------------------------------
# Pallas kernel: GRU over time (PyTorch gate order r|z|n) + mean pool + linear
# classifier.  Grid = (batch blocks [parallel], time tiles [arbitrary]).
# ----------------------------------------------------------------------------
def _gru_mean_classifier_kernel(x_ref,      # (tT, B_blk, D)  time-major encoder tile (bf16)
                                wih_ref,    # (D, 3*Hp)       input->gates  (r|z|n), lane-aligned
                                whh_ref,    # (Hp, 3*Hp)      hidden->gates (r|z|n), lane-aligned
                                bih_ref,    # (1, 3*Hp)
                                bhh_ref,    # (1, 3*Hp)
                                wc_ref,     # (Hp, Cp)        classifier weight (zero-padded)
                                bc_ref,     # (1, Cp)         classifier bias   (zero-padded)
                                out_ref,    # (B_blk, Cp)     lane-dense logits block
                                h_ref,      # scratch (B_blk, Hp)  carried hidden state
                                acc_ref,    # scratch (B_blk, Hp)  carried sum over time
                                *, seq_len):
    t_idx = pl.program_id(1)

    @pl.when(t_idx == 0)
    def _init():
        h_ref[...] = jnp.zeros_like(h_ref)
        acc_ref[...] = jnp.zeros_like(acc_ref)

    tT, B_blk, D = x_ref.shape
    Hp = whh_ref.shape[0]

    # ---- hoisted input projection: ONE MXU matmul for the whole time tile ----
    # bih is folded in here (once per tile, not once per step).
    x_blk = x_ref[...].astype(jnp.float32)                       # bf16 stream -> f32 math
    gx = jnp.dot(x_blk.reshape(tT * B_blk, D), wih_ref[...],
                 preferred_element_type=jnp.float32) + bih_ref[...]   # (tT*B_blk, 3Hp)

    whh = whh_ref[...]
    bhh = jnp.broadcast_to(bhh_ref[...], (B_blk, 3 * Hp))        # hoisted broadcast

    h = h_ref[...]
    acc = acc_ref[...]
    # Static unroll over the (small) time tile: only h @ whh is on the
    # sequential critical path; all gate slices are 128-lane aligned.
    for i in range(tT):
        gx_t = gx[i * B_blk:(i + 1) * B_blk, :]                  # sublane-aligned static slice
        gh = jnp.dot(h, whh, preferred_element_type=jnp.float32) + bhh
        r = jax.nn.sigmoid(gx_t[:, 0:Hp] + gh[:, 0:Hp])
        z = jax.nn.sigmoid(gx_t[:, Hp:2 * Hp] + gh[:, Hp:2 * Hp])
        n = jnp.tanh(gx_t[:, 2 * Hp:3 * Hp] + r * gh[:, 2 * Hp:3 * Hp])
        h = (1.0 - z) * n + z * h
        acc = acc + h
    h_ref[...] = h
    acc_ref[...] = acc

    @pl.when(t_idx == pl.num_programs(1) - 1)
    def _finalize():
        h_mean = acc * (1.0 / seq_len)                           # mean over time
        out_ref[...] = (jnp.dot(h_mean, wc_ref[...],
                                preferred_element_type=jnp.float32) + bc_ref[...])


def _pack_gates_lane_aligned(w, H, Hp):
    """(rows, 3H) packed r|z|n  ->  (rows, 3Hp) with each gate at a 128-lane boundary."""
    out = jnp.zeros((w.shape[0], 3 * Hp), jnp.float32)
    for g in range(3):
        out = out.at[:, g * Hp:g * Hp + H].set(w[:, g * H:(g + 1) * H].astype(jnp.float32))
    return out


def gru_mean_classifier(hidden_states, wih, whh, bih, bhh, wc, bc,
                        *, t_block=None, x_dtype=jnp.bfloat16):
    """hidden_states: (B, T, D) batch-first like PyTorch. Returns (B, C) f32 logits."""
    B, T, D = hidden_states.shape
    H = whh.shape[0]
    C = wc.shape[1]

    Hp = _round_up(H, _LANE)            # 128-lane aligned gates (zero-padded)
    Cp = _round_up(C, _LANE)            # lane-dense classifier output
    Bp = _round_up(B, _SUBLANE)         # full-sublane batch
    if Bp > 16:                         # larger batches: 16-row blocks keep bf16 tiles
        Bp = _round_up(B, 16)           # aligned and feed >1 batch block to v7x's 2 TCs
        b_block = 16
    else:
        b_block = Bp
    n_b = Bp // b_block

    if t_block is None:
        t_block = _largest_divisor_leq(T, 32)
    assert T % t_block == 0, "t_block must divide the encoder sequence length"
    n_t = T // t_block

    # Time-major + batch-pad + bf16 cast: the pad forces one materialization
    # anyway, so XLA fuses the transpose into it (no standalone HBM transpose).
    x = jnp.swapaxes(hidden_states, 0, 1).astype(x_dtype)        # (T, B, D)
    x = jnp.pad(x, ((0, 0), (0, Bp - B), (0, 0)))                # (T, Bp, D)

    # Zero-padded, gate-lane-aligned weights.  Padded hidden lanes provably stay
    # at 0 through the recurrence (zero bih/bhh/whh pads) and padded classifier
    # rows/lanes are zero, so padding cannot leak into the real logits.
    wih_p = _pack_gates_lane_aligned(wih, H, Hp)                                  # (D, 3Hp)
    whh_p = jnp.zeros((Hp, 3 * Hp), jnp.float32).at[:H, :].set(
        _pack_gates_lane_aligned(whh, H, Hp))                                     # (Hp, 3Hp)
    bih_p = _pack_gates_lane_aligned(bih.reshape(1, 3 * H), H, Hp)                # (1, 3Hp)
    bhh_p = _pack_gates_lane_aligned(bhh.reshape(1, 3 * H), H, Hp)                # (1, 3Hp)
    wc_p = jnp.zeros((Hp, Cp), jnp.float32).at[:H, :C].set(wc.astype(jnp.float32))
    bc_p = jnp.zeros((1, Cp), jnp.float32).at[:, :C].set(bc.astype(jnp.float32))

    kernel = functools.partial(_gru_mean_classifier_kernel, seq_len=T)

    out_p = pl.pallas_call(
        kernel,
        out_shape=jax.ShapeDtypeStruct((Bp, Cp), jnp.float32),
        grid_spec=pltpu.PrefetchScalarGridSpec(
            num_scalar_prefetch=0,
            grid=(n_b, n_t),   # (batch blocks, time tiles)
            in_specs=[
                pl.BlockSpec((t_block, b_block, D), lambda b, t: (t, b, 0)),
                pl.BlockSpec((D, 3 * Hp), lambda b, t: (0, 0)),
                pl.BlockSpec((Hp, 3 * Hp), lambda b, t: (0, 0)),
                pl.BlockSpec((1, 3 * Hp), lambda b, t: (0, 0)),
                pl.BlockSpec((1, 3 * Hp), lambda b, t: (0, 0)),
                pl.BlockSpec((Hp, Cp), lambda b, t: (0, 0)),
                pl.BlockSpec((1, Cp), lambda b, t: (0, 0)),
            ],
            out_specs=pl.BlockSpec((b_block, Cp), lambda b, t: (b, 0)),
            scratch_shapes=[
                pltpu.VMEM((b_block, Hp), jnp.float32),   # carried hidden state h
                pltpu.VMEM((b_block, Hp), jnp.float32),   # carried sum of h over time
            ],
        ),
        compiler_params=pltpu.CompilerParams(
            # batch axis parallel (v7x: 2 TensorCores), time axis sequential.
            dimension_semantics=("parallel", "arbitrary"),
            # Explicit limit sized for the smallest-VMEM target (v7x: 64 MiB/TC);
            # 2 double-buffered bf16 x tiles + weights stay far below this.
            vmem_limit_bytes=32 * 1024 * 1024,
        ),
    )(x, wih_p, whh_p, bih_p, bhh_p, wc_p, bc_p)

    return out_p[:B, :C]


# ----------------------------------------------------------------------------
# Frozen-encoder stand-in (plain JAX glue): Whisper conv front-end.
# ----------------------------------------------------------------------------
def encoder_stub(input_features, c1_w, c1_b, c2_w, c2_b):
    """input_features: (B, n_mels, frames) NCW -> hidden_states (B, T, d_model)."""
    dn = ("NCH", "OIH", "NCH")
    h = lax.conv_general_dilated(input_features, c1_w, window_strides=(1,),
                                 padding=((1, 1),), dimension_numbers=dn)
    h = jax.nn.gelu(h + c1_b[None, :, None])
    h = lax.conv_general_dilated(h, c2_w, window_strides=(2,),
                                 padding=((1, 1),), dimension_numbers=dn)
    h = jax.nn.gelu(h + c2_b[None, :, None])
    h = jnp.transpose(h, (0, 2, 1))                       # (B, T, d_model)
    # sinusoidal positions (Whisper-style embed_positions)
    T, D = h.shape[1], h.shape[2]
    pos = jnp.arange(T, dtype=jnp.float32)[:, None]
    dim = jnp.arange(D // 2, dtype=jnp.float32)[None, :]
    inv = jnp.exp(-jnp.log(10000.0) * dim / max(D // 2 - 1, 1))
    pe = jnp.concatenate([jnp.sin(pos * inv), jnp.cos(pos * inv)], axis=-1)
    return h + pe[None]


# ----------------------------------------------------------------------------
# Pure-JAX reference for the GRU + mean + classifier path (f32, unpadded).
# ----------------------------------------------------------------------------
def _reference(hidden_states, wih, whh, bih, bhh, wc, bc):
    B, T, D = hidden_states.shape
    H = whh.shape[0]

    def step(h, x_t):
        gx = x_t @ wih + bih
        gh = h @ whh + bhh
        r = jax.nn.sigmoid(gx[:, :H] + gh[:, :H])
        z = jax.nn.sigmoid(gx[:, H:2 * H] + gh[:, H:2 * H])
        n = jnp.tanh(gx[:, 2 * H:] + r * gh[:, 2 * H:])
        h_new = (1.0 - z) * n + z * h
        return h_new, h_new

    _, hs = lax.scan(step, jnp.zeros((B, H), jnp.float32),
                     jnp.transpose(hidden_states, (1, 0, 2)))
    return hs.mean(axis=0) @ wc + bc


if __name__ == "__main__":
    # Small shapes consistent with the module's forward.
    B, n_mels, frames = 2, 16, 16        # input_features (NCW)
    d_model = 64                         # whisper d_model (small stand-in)
    H = 32                               # rnn hidden_size
    C = 6                                # classifier output classes
    T = frames // 2                      # encoder downsamples time by 2

    key = jax.random.PRNGKey(0)
    ks = jax.random.split(key, 10)

    input_features = jax.random.normal(ks[0], (B, n_mels, frames), jnp.float32)

    # encoder-stub conv params
    c1_w = 0.1 * jax.random.normal(ks[1], (d_model, n_mels, 3), jnp.float32)
    c1_b = 0.1 * jax.random.normal(ks[2], (d_model,), jnp.float32)
    c2_w = 0.1 * jax.random.normal(ks[3], (d_model, d_model, 3), jnp.float32)
    c2_b = 0.1 * jax.random.normal(ks[4], (d_model,), jnp.float32)

    # GRU params (PyTorch gate order r|z|n, stored pre-transposed: (in, 3H))
    wih = 0.1 * jax.random.normal(ks[5], (d_model, 3 * H), jnp.float32)
    whh = 0.1 * jax.random.normal(ks[6], (H, 3 * H), jnp.float32)
    bih = 0.1 * jax.random.normal(ks[7], (3 * H,), jnp.float32)
    bhh = 0.1 * jax.random.normal(ks[8], (3 * H,), jnp.float32)

    # classifier params (stored as (H, C))
    wc = 0.1 * jax.random.normal(ks[9], (H, C), jnp.float32)
    bc = jnp.zeros((C,), jnp.float32)

    # Frozen encoder (plain JAX glue, "with torch.no_grad()" analogue)
    hidden_states = encoder_stub(input_features, c1_w, c1_b, c2_w, c2_b)  # (B, T, d_model)

    # Pallas kernel: GRU -> mean(dim=1) -> Linear.  t_block=4 -> 2 time tiles,
    # exercising the scratch-carried recurrence + pipelined x DMA.
    logits = gru_mean_classifier(hidden_states, wih, whh, bih, bhh, wc, bc,
                                 t_block=4)
    logits = jax.block_until_ready(logits)

    ref = _reference(hidden_states, wih, whh, bih, bhh, wc, bc)
    np.testing.assert_allclose(np.asarray(logits), np.asarray(ref),
                               rtol=1e-2, atol=1e-2)

    print("KERNEL_OK")
</pallas_src>

<mosaic_0001>
module attributes {stable_mosaic.version = 11 : i64} {
  func.func @_gru_mean_classifier_kernel(%arg0: i32, %arg1: i32, %arg2: memref<4x8x64xbf16, #tpu.memory_space<vmem>>, %arg3: memref<64x384xf32, #tpu.memory_space<vmem>>, %arg4: memref<128x384xf32, #tpu.memory_space<vmem>>, %arg5: memref<1x384xf32, #tpu.memory_space<vmem>>, %arg6: memref<1x384xf32, #tpu.memory_space<vmem>>, %arg7: memref<128x128xf32, #tpu.memory_space<vmem>>, %arg8: memref<1x128xf32, #tpu.memory_space<vmem>>, %arg9: memref<8x128xf32, #tpu.memory_space<vmem>>, %arg10: memref<8x128xf32, #tpu.memory_space<vmem>>, %arg11: memref<8x128xf32, #tpu.memory_space<vmem>>) attributes {dimension_semantics = [#tpu.dimension_semantics<parallel>, #tpu.dimension_semantics<arbitrary>], iteration_bounds = array<i64: 1, 2>, scalar_prefetch = 0 : i64, scratch_operands = 2 : i64, tpu.core_type = #tpu.core_type<tc>, window_params = [{transform_indices = @transform_0, window_bounds = array<i64: 4, 8, 64>}, {pipeline_mode = #tpu.pipeline_mode<synchronous>, transform_indices = @transform_1, window_bounds = array<i64: 64, 384>}, {pipeline_mode = #tpu.pipeline_mode<synchronous>, transform_indices = @transform_2, window_bounds = array<i64: 128, 384>}, {pipeline_mode = #tpu.pipeline_mode<synchronous>, transform_indices = @transform_3, window_bounds = array<i64: 1, 384>}, {pipeline_mode = #tpu.pipeline_mode<synchronous>, transform_indices = @transform_4, window_bounds = array<i64: 1, 384>}, {pipeline_mode = #tpu.pipeline_mode<synchronous>, transform_indices = @transform_5, window_bounds = array<i64: 128, 128>}, {pipeline_mode = #tpu.pipeline_mode<synchronous>, transform_indices = @transform_6, window_bounds = array<i64: 1, 128>}, {transform_indices = @transform_7, window_bounds = array<i64: 8, 128>}]} {
    %c0_i32 = arith.constant 0 : i32
    %0 = arith.cmpi eq, %arg1, %c0_i32 : i32
    %1 = arith.extui %0 : i1 to i32
    %c0_i32_0 = arith.constant 0 : i32
    %2 = arith.cmpi ne, %1, %c0_i32_0 : i32
    scf.if %2 {
      %cst_36 = arith.constant 0.000000e+00 : f32
      %142 = vector.broadcast %cst_36 : f32 to vector<8x128xf32>
      %c0_37 = arith.constant 0 : index
      %c0_38 = arith.constant 0 : index
      %143 = vector.load %arg10[%c0_37, %c0_38] : memref<8x128xf32, #tpu.memory_space<vmem>>, vector<8x128xf32>
      tpu.vector_store %arg10[%c0_37, %c0_38], %142 {strides = array<i32>} : memref<8x128xf32, #tpu.memory_space<vmem>>, vector<8x128xf32>,
      %cst_39 = arith.constant 0.000000e+00 : f32
      %144 = vector.broadcast %cst_39 : f32 to vector<8x128xf32>
      %c0_40 = arith.constant 0 : index
      %c0_41 = arith.constant 0 : index
      %145 = vector.load %arg11[%c0_40, %c0_41] : memref<8x128xf32, #tpu.memory_space<vmem>>, vector<8x128xf32>
      tpu.vector_store %arg11[%c0_40, %c0_41], %144 {strides = array<i32>} : memref<8x128xf32, #tpu.memory_space<vmem>>, vector<8x128xf32>,
    } else {
    }
    %c0 = arith.constant 0 : index
    %c0_1 = arith.constant 0 : index
    %c0_2 = arith.constant 0 : index
    %3 = vector.load %arg2[%c0, %c0_1, %c0_2] : memref<4x8x64xbf16, #tpu.memory_space<vmem>>, vector<4x8x64xbf16>
    %4 = arith.extf %3 : vector<4x8x64xbf16> to vector<4x8x64xf32>
    %5 = vector.shape_cast %4 : vector<4x8x64xf32> to vector<32x64xf32>
    %c0_3 = arith.constant 0 : index
    %c0_4 = arith.constant 0 : index
    %6 = vector.load %arg3[%c0_3, %c0_4] : memref<64x384xf32, #tpu.memory_space<vmem>>, vector<64x384xf32>
    %cst = arith.constant dense<0.000000e+00> : vector<32x384xf32>
    %7 = tpu.matmul %5, %6, %cst {dimension_numbers = #tpu.dot_dimension_numbers<[1], [0], [0], [1], [0, 0, 1, 1], [], []>} : vector<32x64xf32>, vector<64x384xf32>, vector<32x384xf32> -> vector<32x384xf32>
    %c0_5 = arith.constant 0 : index
    %c0_6 = arith.constant 0 : index
    %8 = vector.load %arg5[%c0_5, %c0_6] : memref<1x384xf32, #tpu.memory_space<vmem>>, vector<1x384xf32>
    %9 = vector.broadcast %8 : vector<1x384xf32> to vector<32x384xf32>
    %10 = arith.addf %7, %9 : vector<32x384xf32>
    %c0_7 = arith.constant 0 : index
    %c0_8 = arith.constant 0 : index
    %11 = vector.load %arg4[%c0_7, %c0_8] : memref<128x384xf32, #tpu.memory_space<vmem>>, vector<128x384xf32>
    %c0_9 = arith.constant 0 : index
    %c0_10 = arith.constant 0 : index
    %12 = vector.load %arg6[%c0_9, %c0_10] : memref<1x384xf32, #tpu.memory_space<vmem>>, vector<1x384xf32>
    %13 = vector.shape_cast %12 : vector<1x384xf32> to vector<1x384xf32>
    %14 = vector.broadcast %13 : vector<1x384xf32> to vector<8x384xf32>
    %c0_11 = arith.constant 0 : index
    %c0_12 = arith.constant 0 : index
    %15 = vector.load %arg10[%c0_11, %c0_12] : memref<8x128xf32, #tpu.memory_space<vmem>>, vector<8x128xf32>
    %c0_13 = arith.constant 0 : index
    %c0_14 = arith.constant 0 : index
    %16 = vector.load %arg11[%c0_13, %c0_14] : memref<8x128xf32, #tpu.memory_space<vmem>>, vector<8x128xf32>
    %17 = vector.extract_strided_slice %10 {offsets = [0, 0], sizes = [8, 384], strides = [1, 1]} : vector<32x384xf32> to vector<8x384xf32>
    %cst_15 = arith.constant dense<0.000000e+00> : vector<8x384xf32>
    %18 = tpu.matmul %15, %11, %cst_15 {dimension_numbers = #tpu.dot_dimension_numbers<[1], [0], [0], [1], [0, 0, 1, 1], [], []>} : vector<8x128xf32>, vector<128x384xf32>, vector<8x384xf32> -> vector<8x384xf32>
    %19 = arith.addf %18, %14 : vector<8x384xf32>
    %20 = vector.extract_strided_slice %17 {offsets = [0, 0], sizes = [8, 128], strides = [1, 1]} : vector<8x384xf32> to vector<8x128xf32>
    %21 = vector.extract_strided_slice %19 {offsets = [0, 0], sizes = [8, 128], strides = [1, 1]} : vector<8x384xf32> to vector<8x128xf32>
    %22 = arith.addf %20, %21 : vector<8x128xf32>
    %23 = arith.negf %22 : vector<8x128xf32>
    %24 = math.exp %23 : vector<8x128xf32>
    %cst_16 = arith.constant 1.000000e+00 : f32
    %25 = vector.broadcast %cst_16 : f32 to vector<8x128xf32>
    %26 = arith.addf %25, %24 : vector<8x128xf32>
    %27 = arith.divf %25, %26 : vector<8x128xf32>
    %28 = vector.extract_strided_slice %17 {offsets = [0, 128], sizes = [8, 128], strides = [1, 1]} : vector<8x384xf32> to vector<8x128xf32>
    %29 = vector.extract_strided_slice %19 {offsets = [0, 128], sizes = [8, 128], strides = [1, 1]} : vector<8x384xf32> to vector<8x128xf32>
    %30 = arith.addf %28, %29 : vector<8x128xf32>
    %31 = arith.negf %30 : vector<8x128xf32>
    %32 = math.exp %31 : vector<8x128xf32>
    %cst_17 = arith.constant 1.000000e+00 : f32
    %33 = vector.broadcast %cst_17 : f32 to vector<8x128xf32>
    %34 = arith.addf %33, %32 : vector<8x128xf32>
    %35 = arith.divf %33, %34 : vector<8x128xf32>
    %36 = vector.extract_strided_slice %17 {offsets = [0, 256], sizes = [8, 128], strides = [1, 1]} : vector<8x384xf32> to vector<8x128xf32>
    %37 = vector.extract_strided_slice %19 {offsets = [0, 256], sizes = [8, 128], strides = [1, 1]} : vector<8x384xf32> to vector<8x128xf32>
    %38 = arith.mulf %27, %37 : vector<8x128xf32>
    %39 = arith.addf %36, %38 : vector<8x128xf32>
    %40 = math.tanh %39 : vector<8x128xf32>
    %cst_18 = arith.constant 1.000000e+00 : f32
    %41 = vector.broadcast %cst_18 : f32 to vector<8x128xf32>
    %42 = arith.subf %41, %35 : vector<8x128xf32>
    %43 = arith.mulf %42, %40 : vector<8x128xf32>
    %44 = arith.mulf %35, %15 : vector<8x128xf32>
    %45 = arith.addf %43, %44 : vector<8x128xf32>
    %46 = arith.addf %16, %45 : vector<8x128xf32>
    %47 = vector.extract_strided_slice %10 {offsets = [8, 0], sizes = [8, 384], strides = [1, 1]} : vector<32x384xf32> to vector<8x384xf32>
    %cst_19 = arith.constant dense<0.000000e+00> : vector<8x384xf32>
    %48 = tpu.matmul %45, %11, %cst_19 {dimension_numbers = #tpu.dot_dimension_numbers<[1], [0], [0], [1], [0, 0, 1, 1], [], []>} : vector<8x128xf32>, vector<128x384xf32>, vector<8x384xf32> -> vector<8x384xf32>
    %49 = arith.addf %48, %14 : vector<8x384xf32>
    %50 = vector.extract_strided_slice %47 {offsets = [0, 0], sizes = [8, 128], strides = [1, 1]} : vector<8x384xf32> to vector<8x128xf32>
    %51 = vector.extract_strided_slice %49 {offsets = [0, 0], sizes = [8, 128], strides = [1, 1]} : vector<8x384xf32> to vector<8x128xf32>
    %52 = arith.addf %50, %51 : vector<8x128xf32>
    %53 = arith.negf %52 : vector<8x128xf32>
    %54 = math.exp %53 : vector<8x128xf32>
    %cst_20 = arith.constant 1.000000e+00 : f32
    %55 = vector.broadcast %cst_20 : f32 to vector<8x128xf32>
    %56 = arith.addf %55, %54 : vector<8x128xf32>
    %57 = arith.divf %55, %56 : vector<8x128xf32>
    %58 = vector.extract_strided_slice %47 {offsets = [0, 128], sizes = [8, 128], strides = [1, 1]} : vector<8x384xf32> to vector<8x128xf32>
    %59 = vector.extract_strided_slice %49 {offsets = [0, 128], sizes = [8, 128], strides = [1, 1]} : vector<8x384xf32> to vector<8x128xf32>
    %60 = arith.addf %58, %59 : vector<8x128xf32>
    %61 = arith.negf %60 : vector<8x128xf32>
    %62 = math.exp %61 : vector<8x128xf32>
    %cst_21 = arith.constant 1.000000e+00 : f32
    %63 = vector.broadcast %cst_21 : f32 to vector<8x128xf32>
    %64 = arith.addf %63, %62 : vector<8x128xf32>
    %65 = arith.divf %63, %64 : vector<8x128xf32>
    %66 = vector.extract_strided_slice %47 {offsets = [0, 256], sizes = [8, 128], strides = [1, 1]} : vector<8x384xf32> to vector<8x128xf32>
    %67 = vector.extract_strided_slice %49 {offsets = [0, 256], sizes = [8, 128], strides = [1, 1]} : vector<8x384xf32> to vector<8x128xf32>
    %68 = arith.mulf %57, %67 : vector<8x128xf32>
    %69 = arith.addf %66, %68 : vector<8x128xf32>
    %70 = math.tanh %69 : vector<8x128xf32>
    %cst_22 = arith.constant 1.000000e+00 : f32
    %71 = vector.broadcast %cst_22 : f32 to vector<8x128xf32>
    %72 = arith.subf %71, %65 : vector<8x128xf32>
    %73 = arith.mulf %72, %70 : vector<8x128xf32>
    %74 = arith.mulf %65, %45 : vector<8x128xf32>
    %75 = arith.addf %73, %74 : vector<8x128xf32>
    %76 = arith.addf %46, %75 : vector<8x128xf32>
    %77 = vector.extract_strided_slice %10 {offsets = [16, 0], sizes = [8, 384], strides = [1, 1]} : vector<32x384xf32> to vector<8x384xf32>
    %cst_23 = arith.constant dense<0.000000e+00> : vector<8x384xf32>
    %78 = tpu.matmul %75, %11, %cst_23 {dimension_numbers = #tpu.dot_dimension_numbers<[1], [0], [0], [1], [0, 0, 1, 1], [], []>} : vector<8x128xf32>, vector<128x384xf32>, vector<8x384xf32> -> vector<8x384xf32>
    %79 = arith.addf %78, %14 : vector<8x384xf32>
    %80 = vector.extract_strided_slice %77 {offsets = [0, 0], sizes = [8, 128], strides = [1, 1]} : vector<8x384xf32> to vector<8x128xf32>
    %81 = vector.extract_strided_slice %79 {offsets = [0, 0], sizes = [8, 128], strides = [1, 1]} : vector<8x384xf32> to vector<8x128xf32>
    %82 = arith.addf %80, %81 : vector<8x128xf32>
    %83 = arith.negf %82 : vector<8x128xf32>
    %84 = math.exp %83 : vector<8x128xf32>
    %cst_24 = arith.constant 1.000000e+00 : f32
    %85 = vector.broadcast %cst_24 : f32 to vector<8x128xf32>
    %86 = arith.addf %85, %84 : vector<8x128xf32>
    %87 = arith.divf %85, %86 : vector<8x128xf32>
    %88 = vector.extract_strided_slice %77 {offsets = [0, 128], sizes = [8, 128], strides = [1, 1]} : vector<8x384xf32> to vector<8x128xf32>
    %89 = vector.extract_strided_slice %79 {offsets = [0, 128], sizes = [8, 128], strides = [1, 1]} : vector<8x384xf32> to vector<8x128xf32>
    %90 = arith.addf %88, %89 : vector<8x128xf32>
    %91 = arith.negf %90 : vector<8x128xf32>
    %92 = math.exp %91 : vector<8x128xf32>
    %cst_25 = arith.constant 1.000000e+00 : f32
    %93 = vector.broadcast %cst_25 : f32 to vector<8x128xf32>
    %94 = arith.addf %93, %92 : vector<8x128xf32>
    %95 = arith.divf %93, %94 : vector<8x128xf32>
    %96 = vector.extract_strided_slice %77 {offsets = [0, 256], sizes = [8, 128], strides = [1, 1]} : vector<8x384xf32> to vector<8x128xf32>
    %97 = vector.extract_strided_slice %79 {offsets = [0, 256], sizes = [8, 128], strides = [1, 1]} : vector<8x384xf32> to vector<8x128xf32>
    %98 = arith.mulf %87, %97 : vector<8x128xf32>
    %99 = arith.addf %96, %98 : vector<8x128xf32>
    %100 = math.tanh %99 : vector<8x128xf32>
    %cst_26 = arith.constant 1.000000e+00 : f32
    %101 = vector.broadcast %cst_26 : f32 to vector<8x128xf32>
    %102 = arith.subf %101, %95 : vector<8x128xf32>
    %103 = arith.mulf %102, %100 : vector<8x128xf32>
    %104 = arith.mulf %95, %75 : vector<8x128xf32>
    %105 = arith.addf %103, %104 : vector<8x128xf32>
    %106 = arith.addf %76, %105 : vector<8x128xf32>
    %107 = vector.extract_strided_slice %10 {offsets = [24, 0], sizes = [8, 384], strides = [1, 1]} : vector<32x384xf32> to vector<8x384xf32>
    %cst_27 = arith.constant dense<0.000000e+00> : vector<8x384xf32>
    %108 = tpu.matmul %105, %11, %cst_27 {dimension_numbers = #tpu.dot_dimension_numbers<[1], [0], [0], [1], [0, 0, 1, 1], [], []>} : vector<8x128xf32>, vector<128x384xf32>, vector<8x384xf32> -> vector<8x384xf32>
    %109 = arith.addf %108, %14 : vector<8x384xf32>
    %110 = vector.extract_strided_slice %107 {offsets = [0, 0], sizes = [8, 128], strides = [1, 1]} : vector<8x384xf32> to vector<8x128xf32>
    %111 = vector.extract_strided_slice %109 {offsets = [0, 0], sizes = [8, 128], strides = [1, 1]} : vector<8x384xf32> to vector<8x128xf32>
    %112 = arith.addf %110, %111 : vector<8x128xf32>
    %113 = arith.negf %112 : vector<8x128xf32>
    %114 = math.exp %113 : vector<8x128xf32>
    %cst_28 = arith.constant 1.000000e+00 : f32
    %115 = vector.broadcast %cst_28 : f32 to vector<8x128xf32>
    %116 = arith.addf %115, %114 : vector<8x128xf32>
    %117 = arith.divf %115, %116 : vector<8x128xf32>
    %118 = vector.extract_strided_slice %107 {offsets = [0, 128], sizes = [8, 128], strides = [1, 1]} : vector<8x384xf32> to vector<8x128xf32>
    %119 = vector.extract_strided_slice %109 {offsets = [0, 128], sizes = [8, 128], strides = [1, 1]} : vector<8x384xf32> to vector<8x128xf32>
    %120 = arith.addf %118, %119 : vector<8x128xf32>
    %121 = arith.negf %120 : vector<8x128xf32>
    %122 = math.exp %121 : vector<8x128xf32>
    %cst_29 = arith.constant 1.000000e+00 : f32
    %123 = vector.broadcast %cst_29 : f32 to vector<8x128xf32>
    %124 = arith.addf %123, %122 : vector<8x128xf32>
    %125 = arith.divf %123, %124 : vector<8x128xf32>
    %126 = vector.extract_strided_slice %107 {offsets = [0, 256], sizes = [8, 128], strides = [1, 1]} : vector<8x384xf32> to vector<8x128xf32>
    %127 = vector.extract_strided_slice %109 {offsets = [0, 256], sizes = [8, 128], strides = [1, 1]} : vector<8x384xf32> to vector<8x128xf32>
    %128 = arith.mulf %117, %127 : vector<8x128xf32>
    %129 = arith.addf %126, %128 : vector<8x128xf32>
    %130 = math.tanh %129 : vector<8x128xf32>
    %cst_30 = arith.constant 1.000000e+00 : f32
    %131 = vector.broadcast %cst_30 : f32 to vector<8x128xf32>
    %132 = arith.subf %131, %125 : vector<8x128xf32>
    %133 = arith.mulf %132, %130 : vector<8x128xf32>
    %134 = arith.mulf %125, %105 : vector<8x128xf32>
    %135 = arith.addf %133, %134 : vector<8x128xf32>
    %136 = arith.addf %106, %135 : vector<8x128xf32>
    %c0_31 = arith.constant 0 : index
    %c0_32 = arith.constant 0 : index
    %137 = vector.load %arg10[%c0_31, %c0_32] : memref<8x128xf32, #tpu.memory_space<vmem>>, vector<8x128xf32>
    tpu.vector_store %arg10[%c0_31, %c0_32], %135 {strides = array<i32>} : memref<8x128xf32, #tpu.memory_space<vmem>>, vector<8x128xf32>,
    %c0_33 = arith.constant 0 : index
    %c0_34 = arith.constant 0 : index
    %138 = vector.load %arg11[%c0_33, %c0_34] : memref<8x128xf32, #tpu.memory_space<vmem>>, vector<8x128xf32>
    tpu.vector_store %arg11[%c0_33, %c0_34], %136 {strides = array<i32>} : memref<8x128xf32, #tpu.memory_space<vmem>>, vector<8x128xf32>,
    %c1_i32 = arith.constant 1 : i32
    %139 = arith.cmpi eq, %arg1, %c1_i32 : i32
    %140 = arith.extui %139 : i1 to i32
    %c0_i32_35 = arith.constant 0 : i32
    %141 = arith.cmpi ne, %140, %c0_i32_35 : i32
    scf.if %141 {
      %cst_36 = arith.constant 1.250000e-01 : f32
      %142 = vector.broadcast %cst_36 : f32 to vector<8x128xf32>
      %143 = arith.mulf %136, %142 : vector<8x128xf32>
      %c0_37 = arith.constant 0 : index
      %c0_38 = arith.constant 0 : index
      %144 = vector.load %arg7[%c0_37, %c0_38] : memref<128x128xf32, #tpu.memory_space<vmem>>, vector<128x128xf32>
      %cst_39 = arith.constant dense<0.000000e+00> : vector<8x128xf32>
      %145 = tpu.matmul %143, %144, %cst_39 {dimension_numbers = #tpu.dot_dimension_numbers<[1], [0], [0], [1], [0, 0, 1, 1], [], []>} : vector<8x128xf32>, vector<128x128xf32>, vector<8x128xf32> -> vector<8x128xf32>
      %c0_40 = arith.constant 0 : index
      %c0_41 = arith.constant 0 : index
      %146 = vector.load %arg8[%c0_40, %c0_41] : memref<1x128xf32, #tpu.memory_space<vmem>>, vector<1x128xf32>
      %147 = vector.broadcast %146 : vector<1x128xf32> to vector<8x128xf32>
      %148 = arith.addf %145, %147 : vector<8x128xf32>
      %c0_42 = arith.constant 0 : index
      %c0_43 = arith.constant 0 : index
      %149 = vector.load %arg9[%c0_42, %c0_43] : memref<8x128xf32, #tpu.memory_space<vmem>>, vector<8x128xf32>
      tpu.vector_store %arg9[%c0_42, %c0_43], %148 {strides = array<i32>} : memref<8x128xf32, #tpu.memory_space<vmem>>, vector<8x128xf32>,
    } else {
    }
    return
  }
  func.func @transform_0(%arg0: i32, %arg1: i32) -> (i32, i32, i32) {
    %c0_i32 = arith.constant 0 : i32
    %c0_i32_0 = arith.constant 0 : i32
    return %arg1, %arg0, %c0_i32 : i32, i32, i32
  }
  func.func @transform_1(%arg0: i32, %arg1: i32) -> (i32, i32) {
    %c0_i32 = arith.constant 0 : i32
    %c0_i32_0 = arith.constant 0 : i32
    %c0_i32_1 = arith.constant 0 : i32
    return %c0_i32, %c0_i32_0 : i32, i32
  }
  func.func @transform_2(%arg0: i32, %arg1: i32) -> (i32, i32) {
    %c0_i32 = arith.constant 0 : i32
    %c0_i32_0 = arith.constant 0 : i32
    %c0_i32_1 = arith.constant 0 : i32
    return %c0_i32, %c0_i32_0 : i32, i32
  }
  func.func @transform_3(%arg0: i32, %arg1: i32) -> (i32, i32) {
    %c0_i32 = arith.constant 0 : i32
    %c0_i32_0 = arith.constant 0 : i32
    %c0_i32_1 = arith.constant 0 : i32
    return %c0_i32, %c0_i32_0 : i32, i32
  }
  func.func @transform_4(%arg0: i32, %arg1: i32) -> (i32, i32) {
    %c0_i32 = arith.constant 0 : i32
    %c0_i32_0 = arith.constant 0 : i32
    %c0_i32_1 = arith.constant 0 : i32
    return %c0_i32, %c0_i32_0 : i32, i32
  }
  func.func @transform_5(%arg0: i32, %arg1: i32) -> (i32, i32) {
    %c0_i32 = arith.constant 0 : i32
    %c0_i32_0 = arith.constant 0 : i32
    %c0_i32_1 = arith.constant 0 : i32
    return %c0_i32, %c0_i32_0 : i32, i32
  }
  func.func @transform_6(%arg0: i32, %arg1: i32) -> (i32, i32) {
    %c0_i32 = arith.constant 0 : i32
    %c0_i32_0 = arith.constant 0 : i32
    %c0_i32_1 = arith.constant 0 : i32
    return %c0_i32, %c0_i32_0 : i32, i32
  }
  func.func @transform_7(%arg0: i32, %arg1: i32) -> (i32, i32) {
    %c0_i32 = arith.constant 0 : i32
    %c0_i32_0 = arith.constant 0 : i32
    return %arg0, %c0_i32 : i32, i32
  }
}

</mosaic_0001>

<llo_original>
// kernel: tpu_custom_call.1
$region0: #{tpu_custom_call.1}
  #allocation0 [shape = 'u32[]', space=smem, size = 0x4, offset = 0x4, fixed_abs, tag = 'smem constant byte address 0x4 - core index']
  #allocation1 [shape = 'u32[144,128]{1,0:T(1,128)}', space=vmem, size = 0x12000, scoped, tag = 'internal scratch']
  #allocation2 [shape = 'f32[8,128]{1,0:T(8,128)}', space=vmem, size = 0x1000, scoped, tag = 'scratch operand']
  #allocation3 [shape = 'f32[8,128]{1,0:T(8,128)}', space=vmem, size = 0x1000, scoped, tag = 'scratch operand']
  %s0 = inlined_call_operand.hbm [shape: bf16[8,8,64], index: 0, kind: input, shape index: {}]
  %s1 = inlined_call_operand.hbm [shape: f32[64,384], index: 1, kind: input, shape index: {}]
  %s2 = inlined_call_operand.hbm [shape: f32[128,384], index: 2, kind: input, shape index: {}]
  %s3 = inlined_call_operand.vmem [shape: f32[1,384], index: 3, kind: input, shape index: {}]
  %s4 = inlined_call_operand.vmem [shape: f32[1,384], index: 4, kind: input, shape index: {}]
  %s5 = inlined_call_operand.hbm [shape: f32[128,128], index: 5, kind: input, shape index: {}]
  %s6 = inlined_call_operand.vmem [shape: f32[1,128], index: 6, kind: input, shape index: {}]
  %s7 = inlined_call_operand.hbm [shape: f32[8,128], index: 7, kind: output, shape index: {}]
  %s8 = sld [smem:[#allocation0]]
  $region85: #{tpu_custom_call.1} parent=0
    _
  %s10 = ssub.s32 1, %s8
  %s11 = scalar_select 0, %s10, %s8
  $region1: #{tpu_custom_call.1} parent=0
    #allocation4 [shape = 'u8[16384]{0}', space=vmem, size = 0x4000, scoped, tag = 'input window, operand 0']
    #allocation5 [shape = 's32[2]{0}', space=sflag, size = 0x8, scoped, tag = 'scoped memory for tpu_custom_call.1']
    #allocation6 [shape = 's32[2]{0}', space=sflag, size = 0x8, scoped, tag = 'scoped memory for tpu_custom_call.1']
    #allocation7 [shape = 'u8[98304]{0}', space=vmem, size = 0x18000, scoped, tag = 'input window, operand 1, single buffered']
    #allocation8 [shape = 's32[1]{0}', space=sflag, size = 0x4, scoped, tag = 'scoped memory for tpu_custom_call.1']
    #allocation9 [shape = 'u8[196608]{0}', space=vmem, size = 0x30000, scoped, tag = 'input window, operand 2, single buffered']
    #allocation10 [shape = 'u8[65536]{0}', space=vmem, size = 0x10000, scoped, tag = 'input window, operand 5, single buffered']
    #allocation11 [shape = 's32[1]{0}', space=sflag, size = 0x4, scoped, tag = 'scoped memory for tpu_custom_call.1']
    #allocation12 [shape = 'u8[4096]{0}', space=vmem, size = 0x1000, scoped, tag = 'output window, operand 0, single buffered']
    %12 = vsyncpa [#allocation5], 0
    %s13 = scalar_lea.sflag [#allocation5], 1
    %14 = vsyncpa %s13, 0
    %15 = vsyncpa [#allocation8], 0
    %16 = vsyncpa [#allocation11], 0
    %17 = vsyncpa [#allocation6], 0
    loop: start=0, step=1, limit=4
    $region2: #{tpu_custom_call.1} parent=1 // loop_pre_header
      _
    $region3: #{tpu_custom_call.1} parent=1 // loop_header
      %s19 = sphi 0, %s23
      %p20 = scmp.ge.s32.totalorder %s19, 4
      %s26 = sphi 0, %s38
      %s27 = sphi 0, %s34
      %s28 = sphi 0, %s26
      %s29 = sphi 0, %s27
      %s30 = sphi 0, %s28
      %s31 = sphi 0, %s29
      %s43 = sphi 0, %s45
      %s46 = sphi 0, %s43
      %s47 = sphi 0, %s46
      %s63 = sphi 0, %s47
      %s67 = sphi 0, %s67
      %s69 = sphi 0, %s67
      %s70 = sphi 0, %s69
      %s84 = sphi 0, %s70
      %s88 = sphi 0, %s88
      %s90 = sphi 0, %s88
      %s91 = sphi 0, %s90
      %s105 = sphi 0, %s91
      %s109 = sphi 0, %s109
      %s111 = sphi 0, %s109
      %s112 = sphi 0, %s111
      %s126 = sphi 0, %s112
      %s130 = sphi 0, %s130
      %s132 = sphi 0, %s130
      %s133 = sphi 0, %s132
      %s147 = sphi 0, %s133
      %s151 = sphi 0, %s151
      %s153 = sphi 0, %s151
      %s154 = sphi 0, %s153
      %s168 = sphi 0, %s154
      %s172 = sphi 0, %s172
      %s174 = sphi 0, %s172
      %s175 = sphi 0, %s174
      %s189 = sphi 0, %s175
      %s195 = sphi 0, %s197
      %s198 = sphi 0, %s195
      %s199 = sphi 0, %s198
      %s215 = sphi 0, %s199
    $region4: #{tpu_custom_call.1} parent=1 // loop_header_branch
      %22 = sbr.rel (%p20) target = $region8
    $region5: #{tpu_custom_call.1} parent=1 // loop_body
      %s24 = ssub.s32 %s19, 1
      %s25 = ssub.s32 %s19, 2
      %s32 = sadd.s32 1, %s27
      %p33 = scmp.ge.s32.totalorder %s32, 2
      %s34 = scalar_select %p33, 0, %s32
      %s35 = sadd.s32 1, %s26
      %s36 = scalar_select %p33, %s35, %s26
      %p37 = scmp.ge.s32.totalorder %s36, 1
      %s38 = scalar_select %p37, 0, %s36
      %s39 = ssub.s32 %s27, %s34
      %s40 = ssub.s32 %s26, %s38
      %s41 = sor.u32 %s39, %s40
      %p42 = scmp.eq.s32.totalorder %s41, 0
      %s44 = sadd.s32 %s43, 1
      %s45 = scalar_select %p42, %s43, %s44
      %p48 = pneg %p42
      %p49 = scmp.eq.s32.totalorder %s19, 1
      %p50 = por %p48, %p49
      %p51 = scmp.ne.s32.totalorder %s43, %s46
      %p52 = scmp.eq.s32.totalorder %s19, 0
      %p53 = por %p51, %p52
      %p54 = scmp.ne.s32.totalorder %s43, %s46
      %p55 = scmp.eq.s32.totalorder %s24, 1
      %p56 = por %p54, %p55
      %p57 = scmp.ne.s32.totalorder %s46, %s47
      %p58 = scmp.eq.s32.totalorder %s24, 0
      %p59 = por %p57, %p58
      %p60 = scmp.ne.s32.totalorder %s46, %s47
      %p61 = scmp.eq.s32.totalorder %s25, 1
      %p62 = por %p60, %p61
      %p64 = scmp.ne.s32.totalorder %s47, %s63
      %p65 = scmp.eq.s32.totalorder %s25, 0
      %p66 = por %p64, %p65
      %s68 = sadd.s32 %s67, 1
      %p71 = scmp.eq.s32.totalorder %s19, 1
      %p72 = scmp.ne.s32.totalorder %s67, %s69
      %p73 = scmp.eq.s32.totalorder %s19, 0
      %p74 = por %p72, %p73
      %p75 = scmp.ne.s32.totalorder %s67, %s69
      %p76 = scmp.eq.s32.totalorder %s24, 1
      %p77 = por %p75, %p76
      %p78 = scmp.ne.s32.totalorder %s69, %s70
      %p79 = scmp.eq.s32.totalorder %s24, 0
      %p80 = por %p78, %p79
      %p81 = scmp.ne.s32.totalorder %s69, %s70
      %p82 = scmp.eq.s32.totalorder %s25, 1
      %p83 = por %p81, %p82
      %p85 = scmp.ne.s32.totalorder %s70, %s84
      %p86 = scmp.eq.s32.totalorder %s25, 0
      %p87 = por %p85, %p86
      %s89 = sadd.s32 %s88, 1
      %p92 = scmp.eq.s32.totalorder %s19, 1
      %p93 = scmp.ne.s32.totalorder %s88, %s90
      %p94 = scmp.eq.s32.totalorder %s19, 0
      %p95 = por %p93, %p94
      %p96 = scmp.ne.s32.totalorder %s88, %s90
      %p97 = scmp.eq.s32.totalorder %s24, 1
      %p98 = por %p96, %p97
      %p99 = scmp.ne.s32.totalorder %s90, %s91
      %p100 = scmp.eq.s32.totalorder %s24, 0
      %p101 = por %p99, %p100
      %p102 = scmp.ne.s32.totalorder %s90, %s91
      %p103 = scmp.eq.s32.totalorder %s25, 1
      %p104 = por %p102, %p103
      %p106 = scmp.ne.s32.totalorder %s91, %s105
      %p107 = scmp.eq.s32.totalorder %s25, 0
      %p108 = por %p106, %p107
      %s110 = sadd.s32 %s109, 1
      %p113 = scmp.eq.s32.totalorder %s19, 1
      %p114 = scmp.ne.s32.totalorder %s109, %s111
      %p115 = scmp.eq.s32.totalorder %s19, 0
      %p116 = por %p114, %p115
      %p117 = scmp.ne.s32.totalorder %s109, %s111
      %p118 = scmp.eq.s32.totalorder %s24, 1
      %p119 = por %p117, %p118
      %p120 = scmp.ne.s32.totalorder %s111, %s112
      %p121 = scmp.eq.s32.totalorder %s24, 0
      %p122 = por %p120, %p121
      %p123 = scmp.ne.s32.totalorder %s111, %s112
      %p124 = scmp.eq.s32.totalorder %s25, 1
      %p125 = por %p123, %p124
      %p127 = scmp.ne.s32.totalorder %s112, %s126
      %p128 = scmp.eq.s32.totalorder %s25, 0
      %p129 = por %p127, %p128
      %s131 = sadd.s32 %s130, 1
      %p134 = scmp.eq.s32.totalorder %s19, 1
      %p135 = scmp.ne.s32.totalorder %s130, %s132
      %p136 = scmp.eq.s32.totalorder %s19, 0
      %p137 = por %p135, %p136
      %p138 = scmp.ne.s32.totalorder %s130, %s132
      %p139 = scmp.eq.s32.totalorder %s24, 1
      %p140 = por %p138, %p139
      %p141 = scmp.ne.s32.totalorder %s132, %s133
      %p142 = scmp.eq.s32.totalorder %s24, 0
      %p143 = por %p141, %p142
      %p144 = scmp.ne.s32.totalorder %s132, %s133
      %p145 = scmp.eq.s32.totalorder %s25, 1
      %p146 = por %p144, %p145
      %p148 = scmp.ne.s32.totalorder %s133, %s147
      %p149 = scmp.eq.s32.totalorder %s25, 0
      %p150 = por %p148, %p149
      %s152 = sadd.s32 %s151, 1
      %p155 = scmp.eq.s32.totalorder %s19, 1
      %p156 = scmp.ne.s32.totalorder %s151, %s153
      %p157 = scmp.eq.s32.totalorder %s19, 0
      %p158 = por %p156, %p157
      %p159 = scmp.ne.s32.totalorder %s151, %s153
      %p160 = scmp.eq.s32.totalorder %s24, 1
      %p161 = por %p159, %p160
      %p162 = scmp.ne.s32.totalorder %s153, %s154
      %p163 = scmp.eq.s32.totalorder %s24, 0
      %p164 = por %p162, %p163
      %p165 = scmp.ne.s32.totalorder %s153, %s154
      %p166 = scmp.eq.s32.totalorder %s25, 1
      %p167 = por %p165, %p166
      %p169 = scmp.ne.s32.totalorder %s154, %s168
      %p170 = scmp.eq.s32.totalorder %s25, 0
      %p171 = por %p169, %p170
      %s173 = sadd.s32 %s172, 1
      %p176 = scmp.eq.s32.totalorder %s19, 1
      %p177 = scmp.ne.s32.totalorder %s172, %s174
      %p178 = scmp.eq.s32.totalorder %s19, 0
      %p179 = por %p177, %p178
      %p180 = scmp.ne.s32.totalorder %s172, %s174
      %p181 = scmp.eq.s32.totalorder %s24, 1
      %p182 = por %p180, %p181
      %p183 = scmp.ne.s32.totalorder %s174, %s175
      %p184 = scmp.eq.s32.totalorder %s24, 0
      %p185 = por %p183, %p184
      %p186 = scmp.ne.s32.totalorder %s174, %s175
      %p187 = scmp.eq.s32.totalorder %s25, 1
      %p188 = por %p186, %p187
      %p190 = scmp.ne.s32.totalorder %s175, %s189
      %p191 = scmp.eq.s32.totalorder %s25, 0
      %p192 = por %p190, %p191
      %s193 = ssub.s32 %s26, %s38
      %p194 = scmp.eq.s32.totalorder %s193, 0
      %s196 = sadd.s32 %s195, 1
      %s197 = scalar_select %p194, %s195, %s196
      %p200 = pneg %p194
      %p201 = scmp.eq.s32.totalorder %s19, 1
      %p202 = por %p200, %p201
      %p203 = scmp.ne.s32.totalorder %s195, %s198
      %p204 = scmp.eq.s32.totalorder %s19, 0
      %p205 = por %p203, %p204
      %p206 = scmp.ne.s32.totalorder %s195, %s198
      %p207 = scmp.eq.s32.totalorder %s24, 1
      %p208 = por %p206, %p207
      %p209 = scmp.ne.s32.totalorder %s198, %s199
      %p210 = scmp.eq.s32.totalorder %s24, 0
      %p211 = por %p209, %p210
      %p212 = scmp.ne.s32.totalorder %s198, %s199
      %p213 = scmp.eq.s32.totalorder %s25, 1
      %p214 = por %p212, %p213
      %p216 = scmp.ne.s32.totalorder %s199, %s215
      %p217 = scmp.eq.s32.totalorder %s25, 0
      %p218 = por %p216, %p217
      %p219 = scmp.le.s32.totalorder 1, %s19
      %p220 = scmp.lt.s32.totalorder %s19, 3
      %p221 = pnand %p219, %p220
      %p222 = pneg %p221
      // Predicated region
      $region9: #{tpu_custom_call.1} parent=5 // pred_check
        _
      $region10: #{tpu_custom_call.1} parent=5 // pred_check_branch
        %224 = sbr.rel (%p221) target = $region12
      $region11: #{tpu_custom_call.1} parent=5 // pred_region
        %s225 = ssub.s32 %s19, 1
        // Predicated region
        $region13: #{tpu_custom_call.1} parent=11 // pred_check
          %p226 = pneg %p80
        $region14: #{tpu_custom_call.1} parent=11 // pred_check_branch
          %228 = sbr.rel (%p226) target = $region16
        $region15: #{tpu_custom_call.1} parent=11 // pred_region
          %s230 = ssub.s32 3072, 3072
          %231 = vsyncadd [#allocation8], %s230
          %s232 = sshll.u32 [#allocation7], 4
          %s233 = int_to_ptr.vmem [resolvable:$true] %s232
          %238 = dma.hbm_to_vmem [thread:$0]  %s1, 3072, %s233, [#allocation8], 384, 384, 24
        $region16: #{tpu_custom_call.1} parent=11 // pred_fallthru
          _
        // Predicated region
        $region17: #{tpu_custom_call.1} parent=11 // pred_check
          %p239 = pneg %p101
        $region18: #{tpu_custom_call.1} parent=11 // pred_check_branch
          %241 = sbr.rel (%p239) target = $region20
        $region19: #{tpu_custom_call.1} parent=11 // pred_region
          %s243 = ssub.s32 6144, 6144
          %244 = vsyncadd [#allocation8], %s243
          %s245 = sshll.u32 [#allocation9], 4
          %s246 = int_to_ptr.vmem [resolvable:$true] %s245
          %251 = dma.hbm_to_vmem [thread:$0]  %s2, 6144, %s246, [#allocation8], 384, 384, 24
        $region20: #{tpu_custom_call.1} parent=11 // pred_fallthru
          _
        // Predicated region
        $region21: #{tpu_custom_call.1} parent=11 // pred_check
          %p252 = pneg %p122
        $region22: #{tpu_custom_call.1} parent=11 // pred_check_branch
          %254 = sbr.rel (%p252) target = $region24
        $region23: #{tpu_custom_call.1} parent=11 // pred_region
          _
        $region24: #{tpu_custom_call.1} parent=11 // pred_fallthru
          _
        // Predicated region
        $region25: #{tpu_custom_call.1} parent=11 // pred_check
          %p255 = pneg %p143
        $region26: #{tpu_custom_call.1} parent=11 // pred_check_branch
          %257 = sbr.rel (%p255) target = $region28
        $region27: #{tpu_custom_call.1} parent=11 // pred_region
          _
        $region28: #{tpu_custom_call.1} parent=11 // pred_fallthru
          _
        // Predicated region
        $region29: #{tpu_custom_call.1} parent=11 // pred_check
          %p258 = pneg %p164
        $region30: #{tpu_custom_call.1} parent=11 // pred_check_branch
          %260 = sbr.rel (%p258) target = $region32
        $region31: #{tpu_custom_call.1} parent=11 // pred_region
          %s262 = ssub.s32 2048, 2048
          %263 = vsyncadd [#allocation11], %s262
          %s264 = sshll.u32 [#allocation10], 4
          %s265 = int_to_ptr.vmem [resolvable:$true] %s264
          %270 = dma.hbm_to_vmem [thread:$0]  %s5, 2048, %s265, [#allocation11], 128, 128, 8
        $region32: #{tpu_custom_call.1} parent=11 // pred_fallthru
          _
        // Predicated region
        $region33: #{tpu_custom_call.1} parent=11 // pred_check
          %p271 = pneg %p185
        $region34: #{tpu_custom_call.1} parent=11 // pred_check_branch
          %273 = sbr.rel (%p271) target = $region36
        $region35: #{tpu_custom_call.1} parent=11 // pred_region
          _
        $region36: #{tpu_custom_call.1} parent=11 // pred_fallthru
          _
      $region12: #{tpu_custom_call.1} parent=5 // pred_fallthru
        _
      %p274 = scmp.lt.s32.totalorder %s19, 2
      // Predicated region
      $region37: #{tpu_custom_call.1} parent=5 // pred_check
        %p275 = pneg %p274
      $region38: #{tpu_custom_call.1} parent=5 // pred_check_branch
        %277 = sbr.rel (%p275) target = $region40
      $region39: #{tpu_custom_call.1} parent=5 // pred_region
        // Predicated region
        $region41: #{tpu_custom_call.1} parent=39 // pred_check
          %p278 = pneg %p53
        $region42: #{tpu_custom_call.1} parent=39 // pred_check_branch
          %280 = sbr.rel (%p278) target = $region44
        $region43: #{tpu_custom_call.1} parent=39 // pred_region
          %s281 = sand.u32 %s43, 1
          %s282 = scalar_lea.sflag [#allocation5], %s281
          %s283 = sand.u32 %s43, 1
          %s284 = smul.addr %s283, 16
          %s285 = scalar_lea.vmem [#allocation4], %s284
          %s286 = smul.u32 4, %s27
          %s288 = ssub.s32 256, 256
          %289 = vsyncadd %s282, %s288
          %s290 = sadd.s32 %s26, %s286
          %s291 = smul.addr %s290, 64
          %s292 = scalar_lea.hbm %s0, %s291
          %s293 = sshll.u32 %s285, 4
          %s294 = int_to_ptr.vmem [resolvable:$true] %s293
          %299 = dma.hbm_to_vmem [thread:$0]  %s292, 256, %s294, %s282, 64, 64, 4
        $region44: #{tpu_custom_call.1} parent=39 // pred_fallthru
          _
      $region40: #{tpu_custom_call.1} parent=5 // pred_fallthru
        _
      %p300 = scmp.le.s32.totalorder 1, %s19
      %p301 = scmp.lt.s32.totalorder %s19, 3
      %p302 = pnand %p300, %p301
      %p303 = pneg %p302
      // Predicated region
      $region45: #{tpu_custom_call.1} parent=5 // pred_check
        _
      $region46: #{tpu_custom_call.1} parent=5 // pred_check_branch
        %305 = sbr.rel (%p302) target = $region48
      $region47: #{tpu_custom_call.1} parent=5 // pred_region
        %s306 = ssub.s32 %s19, 1
        %s307 = sand.u32 %s46, 1
        %s308 = scalar_lea.sflag [#allocation5], %s307
        %s309 = sand.u32 %s46, 1
        %s310 = smul.addr %s309, 16
        %s311 = scalar_lea.vmem [#allocation4], %s310
        // Predicated region
        $region49: #{tpu_custom_call.1} parent=47 // pred_check
          %p312 = pneg %p59
        $region50: #{tpu_custom_call.1} parent=47 // pred_check_branch
          %314 = sbr.rel (%p312) target = $region52
        $region51: #{tpu_custom_call.1} parent=47 // pred_region
          %315 = dma.done %s308, 256
        $region52: #{tpu_custom_call.1} parent=47 // pred_fallthru
          _
        // Predicated region
        $region53: #{tpu_custom_call.1} parent=47 // pred_check
          %p316 = pneg %p80
        $region54: #{tpu_custom_call.1} parent=47 // pred_check_branch
          %318 = sbr.rel (%p316) target = $region56
        $region55: #{tpu_custom_call.1} parent=47 // pred_region
          %319 = dma.done [#allocation8], 3072
        $region56: #{tpu_custom_call.1} parent=47 // pred_fallthru
          _
        // Predicated region
        $region57: #{tpu_custom_call.1} parent=47 // pred_check
          %p320 = pneg %p101
        $region58: #{tpu_custom_call.1} parent=47 // pred_check_branch
          %322 = sbr.rel (%p320) target = $region60
        $region59: #{tpu_custom_call.1} parent=47 // pred_region
          %323 = dma.done [#allocation8], 6144
        $region60: #{tpu_custom_call.1} parent=47 // pred_fallthru
          _
        // Predicated region
        $region61: #{tpu_custom_call.1} parent=47 // pred_check
          %p324 = pneg %p164
        $region62: #{tpu_custom_call.1} parent=47 // pred_check_branch
          %326 = sbr.rel (%p324) target = $region64
        $region63: #{tpu_custom_call.1} parent=47 // pred_region
          %327 = dma.done [#allocation11], 2048
        $region64: #{tpu_custom_call.1} parent=47 // pred_fallthru
          _
        %s328 = sand.u32 %s46, 1
        %s329 = scalar_lea.sflag [#allocation5], %s328
        %s330 = sand.u32 %s46, 1
        %s331 = smul.addr %s330, 16
        %s332 = scalar_lea.vmem [#allocation4], %s331
        %p333 = pneg %p59
        %p334 = pneg %p56
        %p335 = pneg %p80
        %p336 = pneg %p77
        %p337 = pneg %p101
        %p338 = pneg %p98
        %p339 = pneg %p122
        %p340 = pneg %p119
        %p341 = pneg %p143
        %p342 = pneg %p140
        %p343 = pneg %p164
        %p344 = pneg %p161
        %p345 = pneg %p185
        %p346 = pneg %p182
        %p347 = pneg %p211
        %p348 = pneg %p208
        %s349 = smul.u32 4, %s29
        %p350 = scmp.eq.s32.totalorder %s29, 0
        // Predicated region
        $region65: #{tpu_custom_call.1} parent=47 // pred_check
          %p351 = pneg %p350
        $region66: #{tpu_custom_call.1} parent=47 // pred_check_branch
          %353 = sbr.rel (%p351) target = $region68
        $region67: #{tpu_custom_call.1} parent=47 // pred_region
          %354 = vst [vmem:[#allocation2] sm:$0xff] 0.0
          %355 = vst [vmem:[#allocation3] sm:$0xff] 0.0
        $region68: #{tpu_custom_call.1} parent=47 // pred_fallthru
          _
        %v356 = vld [vmem:[%s311] sm:$0xf]
        %v357 = vld [vmem:[%s311 + $0x4] sm:$0xf]
        %v358 = vld [vmem:[%s311 + $0x8] sm:$0xf]
        %v359 = vld [vmem:[%s311 + $0xc] sm:$0xf]
        %v360 = vunpack.c.l.bf16 %v356
        %v361 = vunpack.c.l.bf16 %v357
        %v362 = vunpack.c.l.bf16 %v358
        %v363 = vunpack.c.l.bf16 %v359
        %v364 = vld [vmem:[#allocation7] sm:$0xff]
        %v365 = vld [vmem:[#allocation7 + $0x8] sm:$0xff]
        %v366 = vld [vmem:[#allocation7 + $0x10] sm:$0xff]
        %v367 = vld [vmem:[#allocation7 + $0x18] sm:$0xff]
        %v368 = vld [vmem:[#allocation7 + $0x20] sm:$0xff]
        %v369 = vld [vmem:[#allocation7 + $0x28] sm:$0xff]
        %v370 = vld [vmem:[#allocation7 + $0x30] sm:$0xff]
        %v371 = vld [vmem:[#allocation7 + $0x38] sm:$0xff]
        %v372 = vld [vmem:[#allocation7 + $0x40] sm:$0xff]
        %v373 = vld [vmem:[#allocation7 + $0x48] sm:$0xff]
        %v374 = vld [vmem:[#allocation7 + $0x50] sm:$0xff]
        %v375 = vld [vmem:[#allocation7 + $0x58] sm:$0xff]
        %v376 = vld [vmem:[#allocation7 + $0x60] sm:$0xff]
        %v377 = vld [vmem:[#allocation7 + $0x68] sm:$0xff]
        %v378 = vld [vmem:[#allocation7 + $0x70] sm:$0xff]
        %v379 = vld [vmem:[#allocation7 + $0x78] sm:$0xff]
        %v380 = vld [vmem:[#allocation7 + $0x80] sm:$0xff]
        %v381 = vld [vmem:[#allocation7 + $0x88] sm:$0xff]
        %v382 = vld [vmem:[#allocation7 + $0x90] sm:$0xff]
        %v383 = vld [vmem:[#allocation7 + $0x98] sm:$0xff]
        %v384 = vld [vmem:[#allocation7 + $0xa0] sm:$0xff]
        %v385 = vld [vmem:[#allocation7 + $0xa8] sm:$0xff]
        %v386 = vld [vmem:[#allocation7 + $0xb0] sm:$0xff]
        %v387 = vld [vmem:[#allocation7 + $0xb8] sm:$0xff]
        %v388 = vld [vmem:[%s3] sm:$0x7]
        %v390 = vlaneseq
        %v391 = vshrl.u32 %v390, 7
        %v392 = vsub.s32 0, %v391
        %v393 = vrot.slane %v388, %v392
        %v394 = vlaneseq
        %v395 = vshrl.u32 %v394, 7
        %v396 = vsub.s32 1, %v395
        %v397 = vrot.slane %v388, %v396
        %v398 = vlaneseq
        %v399 = vshrl.u32 %v398, 7
        %v400 = vsub.s32 2, %v399
        %v401 = vrot.slane %v388, %v400
        %vm405 = vcmask 523264
        %v407 = vsel %vm405, %v360, 0
        %v410 = vsel %vm405, %v361, 0
        %v413 = vsel %vm405, %v362, 0
        %v416 = vsel %vm405, %v363, 0
        %418 = vmatprep.subr.mxu0 0.0
        %419 = vmatpush1.msra.mxu0 0.0
        %420 = vmatprep.subr.mxu0 0.0
        %421 = vmatpush1.msra.mxu0 0.0
        %422 = vmatprep.subr.mxu0 0.0
        %423 = vmatpush1.msra.mxu0 0.0
        %424 = vmatprep.subr.mxu0 0.0
        %425 = vmatpush1.msra.mxu0 0.0
        %426 = vmatprep.subr.mxu0 0.0
        %427 = vmatpush1.msra.mxu0 0.0
        %428 = vmatprep.subr.mxu0 0.0
        %429 = vmatpush1.msra.mxu0 0.0
        %430 = vmatprep.subr.mxu0 0.0
        %431 = vmatpush1.msra.mxu0 0.0
        %432 = vmatprep.subr.mxu0 0.0
        %433 = vmatpush1.msra.mxu0 0.0
        %434 = vmatprep.subr.mxu0 %v386
        %435 = vmatpush1.msra.mxu0 %v385
        %436 = vmatprep.subr.mxu0 %v383
        %437 = vmatpush1.msra.mxu0 %v382
        %438 = vmatprep.subr.mxu0 %v380
        %439 = vmatpush1.msra.mxu0 %v379
        %440 = vmatprep.subr.mxu0 %v377
        %441 = vmatpush1.msra.mxu0 %v376
        %442 = vmatprep.subr.mxu0 %v374
        %443 = vmatpush1.msra.mxu0 %v373
        %444 = vmatprep.subr.mxu0 %v371
        %445 = vmatpush1.msra.mxu0 %v370
        %446 = vmatprep.subr.mxu0 %v368
        %447 = vmatpush1.msra.mxu0 %v367
        %448 = vmatprep.subr.mxu0 %v365
        %449 = vmatpush1.msra.mxu0 %v364
        %450 = vmatprep.subr.mxu0 0.0
        %451 = vmatpush2.msra.mxu0 0.0
        %452 = vmatprep.subr.mxu0 0.0
        %453 = vmatpush2.msra.mxu0 0.0
        %454 = vmatprep.subr.mxu0 0.0
        %455 = vmatpush2.msra.mxu0 0.0
        %456 = vmatprep.subr.mxu0 0.0
        %457 = vmatpush2.msra.mxu0 0.0
        %458 = vmatprep.subr.mxu0 0.0
        %459 = vmatpush2.msra.mxu0 0.0
        %460 = vmatprep.subr.mxu0 0.0
        %461 = vmatpush2.msra.mxu0 0.0
        %462 = vmatprep.subr.mxu0 0.0
        %463 = vmatpush2.msra.mxu0 0.0
        %464 = vmatprep.subr.mxu0 0.0
        %465 = vmatpush2.msra.mxu0 0.0
        %466 = vmatprep.subr.mxu0 0.0
        %467 = vmatpush2.msra.mxu0 0.0
        %468 = vmatprep.subr.mxu0 0.0
        %469 = vmatpush2.msra.mxu0 0.0
        %470 = vmatprep.subr.mxu0 0.0
        %471 = vmatpush2.msra.mxu0 0.0
        %472 = vmatprep.subr.mxu0 0.0
        %473 = vmatpush2.msra.mxu0 0.0
        %474 = vmatprep.subr.mxu0 0.0
        %475 = vmatpush2.msra.mxu0 0.0
        %476 = vmatprep.subr.mxu0 0.0
        %477 = vmatpush2.msra.mxu0 0.0
        %478 = vmatprep.subr.mxu0 0.0
        %479 = vmatpush2.msra.mxu0 0.0
        %480 = vmatprep.subr.mxu0 0.0
        %481 = vmatpush2.msra.mxu0 0.0
        %482 = vmatprep.mubr.f32.mxu0 0.0
        %483 = vmatmul.mubr.f32.gmra.mxu0 %v407
        %v484 = vpop.f32.mrf.mxu0
        %v485 = vadd.f32 %v393, %v484
        %v486 = vpop.f32.mrf.mxu0
        %v487 = vadd.f32 %v397, %v486
        %488 = vmatprep.mubr.f32.mxu0 0.0
        %489 = vmatmul.mubr.f32.gmra.mxu0 %v410
        %v490 = vpop.f32.mrf.mxu0
        %v491 = vadd.f32 %v393, %v490
        %v492 = vpop.f32.mrf.mxu0
        %v493 = vadd.f32 %v397, %v492
        %494 = vmatprep.mubr.f32.mxu0 0.0
        %495 = vmatmul.mubr.f32.gmra.mxu0 %v413
        %v496 = vpop.f32.mrf.mxu0
        %v497 = vadd.f32 %v393, %v496
        %v498 = vpop.f32.mrf.mxu0
        %v499 = vadd.f32 %v397, %v498
        %500 = vmatprep.mubr.f32.mxu0 0.0
        %501 = vmatmul.mubr.f32.gmra.mxu0 %v416
        %v502 = vpop.f32.mrf.mxu0
        %v503 = vadd.f32 %v393, %v502
        %v504 = vpop.f32.mrf.mxu0
        %v505 = vadd.f32 %v397, %v504
        %506 = vdwg.mxu0
        %507 = vmatprep.subr.mxu0 0.0
        %508 = vmatpush1.msra.mxu0 0.0
        %509 = vmatprep.subr.mxu0 0.0
        %510 = vmatpush1.msra.mxu0 0.0
        %511 = vmatprep.subr.mxu0 0.0
        %512 = vmatpush1.msra.mxu0 0.0
        %513 = vmatprep.subr.mxu0 0.0
        %514 = vmatpush1.msra.mxu0 0.0
        %515 = vmatprep.subr.mxu0 0.0
        %516 = vmatpush1.msra.mxu0 0.0
        %517 = vmatprep.subr.mxu0 0.0
        %518 = vmatpush1.msra.mxu0 0.0
        %519 = vmatprep.subr.mxu0 0.0
        %520 = vmatpush1.msra.mxu0 0.0
        %521 = vmatprep.subr.mxu0 0.0
        %522 = vmatpush1.msra.mxu0 0.0
        %523 = vmatprep.subr.mxu0 0.0
        %524 = vmatpush1.msra.mxu0 %v387
        %525 = vmatprep.subr.mxu0 0.0
        %526 = vmatpush1.msra.mxu0 %v384
        %527 = vmatprep.subr.mxu0 0.0
        %528 = vmatpush1.msra.mxu0 %v381
        %529 = vmatprep.subr.mxu0 0.0
        %530 = vmatpush1.msra.mxu0 %v378
        %531 = vmatprep.subr.mxu0 0.0
        %532 = vmatpush1.msra.mxu0 %v375
        %533 = vmatprep.subr.mxu0 0.0
        %534 = vmatpush1.msra.mxu0 %v372
        %535 = vmatprep.subr.mxu0 0.0
        %536 = vmatpush1.msra.mxu0 %v369
        %537 = vmatprep.subr.mxu0 0.0
        %538 = vmatpush1.msra.mxu0 %v366
        %539 = vmatprep.subr.mxu0 0.0
        %540 = vmatpush2.msra.mxu0 0.0
        %541 = vmatprep.subr.mxu0 0.0
        %542 = vmatpush2.msra.mxu0 0.0
        %543 = vmatprep.subr.mxu0 0.0
        %544 = vmatpush2.msra.mxu0 0.0
        %545 = vmatprep.subr.mxu0 0.0
        %546 = vmatpush2.msra.mxu0 0.0
        %547 = vmatprep.subr.mxu0 0.0
        %548 = vmatpush2.msra.mxu0 0.0
        %549 = vmatprep.subr.mxu0 0.0
        %550 = vmatpush2.msra.mxu0 0.0
        %551 = vmatprep.subr.mxu0 0.0
        %552 = vmatpush2.msra.mxu0 0.0
        %553 = vmatprep.subr.mxu0 0.0
        %554 = vmatpush2.msra.mxu0 0.0
        %555 = vmatprep.subr.mxu0 0.0
        %556 = vmatpush2.msra.mxu0 0.0
        %557 = vmatprep.subr.mxu0 0.0
        %558 = vmatpush2.msra.mxu0 0.0
        %559 = vmatprep.subr.mxu0 0.0
        %560 = vmatpush2.msra.mxu0 0.0
        %561 = vmatprep.subr.mxu0 0.0
        %562 = vmatpush2.msra.mxu0 0.0
        %563 = vmatprep.subr.mxu0 0.0
        %564 = vmatpush2.msra.mxu0 0.0
        %565 = vmatprep.subr.mxu0 0.0
        %566 = vmatpush2.msra.mxu0 0.0
        %567 = vmatprep.subr.mxu0 0.0
        %568 = vmatpush2.msra.mxu0 0.0
        %569 = vmatprep.subr.mxu0 0.0
        %570 = vmatpush2.msra.mxu0 0.0
        %571 = vmatprep.mubr.f32.mxu0 0.0
        %572 = vmatmul.mubr.f32.gmra.mxu0 %v407
        %v573 = vpop.f32.mrf.mxu0
        %v574 = vadd.f32 %v401, %v573
        %v575 = vpop.f32.mrf.mxu0
        %576 = vmatprep.mubr.f32.mxu0 0.0
        %577 = vmatmul.mubr.f32.gmra.mxu0 %v410
        %v578 = vpop.f32.mrf.mxu0
        %v579 = vadd.f32 %v401, %v578
        %v580 = vpop.f32.mrf.mxu0
        %581 = vmatprep.mubr.f32.mxu0 0.0
        %582 = vmatmul.mubr.f32.gmra.mxu0 %v413
        %v583 = vpop.f32.mrf.mxu0
        %v584 = vadd.f32 %v401, %v583
        %v585 = vpop.f32.mrf.mxu0
        %586 = vmatprep.mubr.f32.mxu0 0.0
        %587 = vmatmul.mubr.f32.gmra.mxu0 %v416
        %v588 = vpop.f32.mrf.mxu0
        %v589 = vadd.f32 %v401, %v588
        %v590 = vpop.f32.mrf.mxu0
        %591 = vdwg.mxu0
        %v592 = vld [vmem:[#allocation9] sm:$0xff]
        %v593 = vld [vmem:[#allocation9 + $0x8] sm:$0xff]
        %v594 = vld [vmem:[#allocation9 + $0x10] sm:$0xff]
        %v595 = vld [vmem:[#allocation9 + $0x18] sm:$0xff]
        %v596 = vld [vmem:[#allocation9 + $0x20] sm:$0xff]
        %v597 = vld [vmem:[#allocation9 + $0x28] sm:$0xff]
        %v598 = vld [vmem:[#allocation9 + $0x30] sm:$0xff]
        %v599 = vld [vmem:[#allocation9 + $0x38] sm:$0xff]
        %v600 = vld [vmem:[#allocation9 + $0x40] sm:$0xff]
        %v601 = vld [vmem:[#allocation9 + $0x48] sm:$0xff]
        %v602 = vld [vmem:[#allocation9 + $0x50] sm:$0xff]
        %v603 = vld [vmem:[#allocation9 + $0x58] sm:$0xff]
        %v604 = vld [vmem:[#allocation9 + $0x60] sm:$0xff]
        %v605 = vld [vmem:[#allocation9 + $0x68] sm:$0xff]
        %v606 = vld [vmem:[#allocation9 + $0x70] sm:$0xff]
        %v607 = vld [vmem:[#allocation9 + $0x78] sm:$0xff]
        %v608 = vld [vmem:[#allocation9 + $0x80] sm:$0xff]
        %v609 = vld [vmem:[#allocation9 + $0x88] sm:$0xff]
        %v610 = vld [vmem:[#allocation9 + $0x90] sm:$0xff]
        %v611 = vld [vmem:[#allocation9 + $0x98] sm:$0xff]
        %v612 = vld [vmem:[#allocation9 + $0xa0] sm:$0xff]
        %v613 = vld [vmem:[#allocation9 + $0xa8] sm:$0xff]
        %v614 = vld [vmem:[#allocation9 + $0xb0] sm:$0xff]
        %v615 = vld [vmem:[#allocation9 + $0xb8] sm:$0xff]
        %v616 = vld [vmem:[#allocation9 + $0xc0] sm:$0xff]
        %v617 = vld [vmem:[#allocation9 + $0xc8] sm:$0xff]
        %v618 = vld [vmem:[#allocation9 + $0xd0] sm:$0xff]
        %v619 = vld [vmem:[#allocation9 + $0xd8] sm:$0xff]
        %v620 = vld [vmem:[#allocation9 + $0xe0] sm:$0xff]
        %v621 = vld [vmem:[#allocation9 + $0xe8] sm:$0xff]
        %v622 = vld [vmem:[#allocation9 + $0xf0] sm:$0xff]
        %v623 = vld [vmem:[#allocation9 + $0xf8] sm:$0xff]
        %v624 = vld [vmem:[#allocation9 + $0x100] sm:$0xff]
        %v625 = vld [vmem:[#allocation9 + $0x108] sm:$0xff]
        %v626 = vld [vmem:[#allocation9 + $0x110] sm:$0xff]
        %v627 = vld [vmem:[#allocation9 + $0x118] sm:$0xff]
        %v628 = vld [vmem:[#allocation9 + $0x120] sm:$0xff]
        %v629 = vld [vmem:[#allocation9 + $0x128] sm:$0xff]
        %v630 = vld [vmem:[#allocation9 + $0x130] sm:$0xff]
        %v631 = vld [vmem:[#allocation9 + $0x138] sm:$0xff]
        %v632 = vld [vmem:[#allocation9 + $0x140] sm:$0xff]
        %v633 = vld [vmem:[#allocation9 + $0x148] sm:$0xff]
        %v634 = vld [vmem:[#allocation9 + $0x150] sm:$0xff]
        %v635 = vld [vmem:[#allocation9 + $0x158] sm:$0xff]
        %v636 = vld [vmem:[#allocation9 + $0x160] sm:$0xff]
        %v637 = vld [vmem:[#allocation9 + $0x168] sm:$0xff]
        %v638 = vld [vmem:[#allocation9 + $0x170] sm:$0xff]
        %v639 = vld [vmem:[#allocation9 + $0x178] sm:$0xff]
        %v640 = vld [vmem:[%s4] sm:$0x7]
        %v642 = vlaneseq
        %v643 = vshrl.u32 %v642, 7
        %v644 = vsub.s32 0, %v643
        %v645 = vrot.slane %v640, %v644
        %v646 = vlaneseq
        %v647 = vshrl.u32 %v646, 7
        %v648 = vsub.s32 1, %v647
        %v649 = vrot.slane %v640, %v648
        %v650 = vlaneseq
        %v651 = vshrl.u32 %v650, 7
        %v652 = vsub.s32 2, %v651
        %v653 = vrot.slane %v640, %v652
        %v657 = vld [vmem:[#allocation2] sm:$0xff]
        %v658 = vld [vmem:[#allocation3] sm:$0xff]
        %659 = vmatprep.subr.mxu0 %v638
        %660 = vmatpush1.msra.mxu0 %v637
        %661 = vmatprep.subr.mxu0 %v635
        %662 = vmatpush1.msra.mxu0 %v634
        %663 = vmatprep.subr.mxu0 %v632
        %664 = vmatpush1.msra.mxu0 %v631
        %665 = vmatprep.subr.mxu0 %v629
        %666 = vmatpush1.msra.mxu0 %v628
        %667 = vmatprep.subr.mxu0 %v626
        %668 = vmatpush1.msra.mxu0 %v625
        %669 = vmatprep.subr.mxu0 %v623
        %670 = vmatpush1.msra.mxu0 %v622
        %671 = vmatprep.subr.mxu0 %v620
        %672 = vmatpush1.msra.mxu0 %v619
        %673 = vmatprep.subr.mxu0 %v617
        %674 = vmatpush1.msra.mxu0 %v616
        %675 = vmatprep.subr.mxu0 %v614
        %676 = vmatpush1.msra.mxu0 %v613
        %677 = vmatprep.subr.mxu0 %v611
        %678 = vmatpush1.msra.mxu0 %v610
        %679 = vmatprep.subr.mxu0 %v608
        %680 = vmatpush1.msra.mxu0 %v607
        %681 = vmatprep.subr.mxu0 %v605
        %682 = vmatpush1.msra.mxu0 %v604
        %683 = vmatprep.subr.mxu0 %v602
        %684 = vmatpush1.msra.mxu0 %v601
        %685 = vmatprep.subr.mxu0 %v599
        %686 = vmatpush1.msra.mxu0 %v598
        %687 = vmatprep.subr.mxu0 %v596
        %688 = vmatpush1.msra.mxu0 %v595
        %689 = vmatprep.subr.mxu0 %v593
        %690 = vmatpush1.msra.mxu0 %v592
        %691 = vmatprep.subr.mxu0 0.0
        %692 = vmatpush2.msra.mxu0 0.0
        %693 = vmatprep.subr.mxu0 0.0
        %694 = vmatpush2.msra.mxu0 0.0
        %695 = vmatprep.subr.mxu0 0.0
        %696 = vmatpush2.msra.mxu0 0.0
        %697 = vmatprep.subr.mxu0 0.0
        %698 = vmatpush2.msra.mxu0 0.0
        %699 = vmatprep.subr.mxu0 0.0
        %700 = vmatpush2.msra.mxu0 0.0
        %701 = vmatprep.subr.mxu0 0.0
        %702 = vmatpush2.msra.mxu0 0.0
        %703 = vmatprep.subr.mxu0 0.0
        %704 = vmatpush2.msra.mxu0 0.0
        %705 = vmatprep.subr.mxu0 0.0
        %706 = vmatpush2.msra.mxu0 0.0
        %707 = vmatprep.subr.mxu0 0.0
        %708 = vmatpush2.msra.mxu0 0.0
        %709 = vmatprep.subr.mxu0 0.0
        %710 = vmatpush2.msra.mxu0 0.0
        %711 = vmatprep.subr.mxu0 0.0
        %712 = vmatpush2.msra.mxu0 0.0
        %713 = vmatprep.subr.mxu0 0.0
        %714 = vmatpush2.msra.mxu0 0.0
        %715 = vmatprep.subr.mxu0 0.0
        %716 = vmatpush2.msra.mxu0 0.0
        %717 = vmatprep.subr.mxu0 0.0
        %718 = vmatpush2.msra.mxu0 0.0
        %719 = vmatprep.subr.mxu0 0.0
        %720 = vmatpush2.msra.mxu0 0.0
        %721 = vmatprep.subr.mxu0 0.0
        %722 = vmatpush2.msra.mxu0 0.0
        %723 = vmatprep.mubr.f32.mxu0 0.0
        %724 = vmatmul.mubr.f32.gmra.mxu0 %v657
        %v725 = vpop.f32.mrf.mxu0
        %v726 = vadd.f32 %v645, %v725
        %v727 = vpop.f32.mrf.mxu0
        %v728 = vadd.f32 %v649, %v727
        %729 = vdwg.mxu0
        %730 = vmatprep.subr.mxu0 0.0
        %731 = vmatpush1.msra.mxu0 %v639
        %732 = vmatprep.subr.mxu0 0.0
        %733 = vmatpush1.msra.mxu0 %v636
        %734 = vmatprep.subr.mxu0 0.0
        %735 = vmatpush1.msra.mxu0 %v633
        %736 = vmatprep.subr.mxu0 0.0
        %737 = vmatpush1.msra.mxu0 %v630
        %738 = vmatprep.subr.mxu0 0.0
        %739 = vmatpush1.msra.mxu0 %v627
        %740 = vmatprep.subr.mxu0 0.0
        %741 = vmatpush1.msra.mxu0 %v624
        %742 = vmatprep.subr.mxu0 0.0
        %743 = vmatpush1.msra.mxu0 %v621
        %744 = vmatprep.subr.mxu0 0.0
        %745 = vmatpush1.msra.mxu0 %v618
        %746 = vmatprep.subr.mxu0 0.0
        %747 = vmatpush1.msra.mxu0 %v615
        %748 = vmatprep.subr.mxu0 0.0
        %749 = vmatpush1.msra.mxu0 %v612
        %750 = vmatprep.subr.mxu0 0.0
        %751 = vmatpush1.msra.mxu0 %v609
        %752 = vmatprep.subr.mxu0 0.0
        %753 = vmatpush1.msra.mxu0 %v606
        %754 = vmatprep.subr.mxu0 0.0
        %755 = vmatpush1.msra.mxu0 %v603
        %756 = vmatprep.subr.mxu0 0.0
        %757 = vmatpush1.msra.mxu0 %v600
        %758 = vmatprep.subr.mxu0 0.0
        %759 = vmatpush1.msra.mxu0 %v597
        %760 = vmatprep.subr.mxu0 0.0
        %761 = vmatpush1.msra.mxu0 %v594
        %762 = vmatprep.subr.mxu0 0.0
        %763 = vmatpush2.msra.mxu0 0.0
        %764 = vmatprep.subr.mxu0 0.0
        %765 = vmatpush2.msra.mxu0 0.0
        %766 = vmatprep.subr.mxu0 0.0
        %767 = vmatpush2.msra.mxu0 0.0
        %768 = vmatprep.subr.mxu0 0.0
        %769 = vmatpush2.msra.mxu0 0.0
        %770 = vmatprep.subr.mxu0 0.0
        %771 = vmatpush2.msra.mxu0 0.0
        %772 = vmatprep.subr.mxu0 0.0
        %773 = vmatpush2.msra.mxu0 0.0
        %774 = vmatprep.subr.mxu0 0.0
        %775 = vmatpush2.msra.mxu0 0.0
        %776 = vmatprep.subr.mxu0 0.0
        %777 = vmatpush2.msra.mxu0 0.0
        %778 = vmatprep.subr.mxu0 0.0
        %779 = vmatpush2.msra.mxu0 0.0
        %780 = vmatprep.subr.mxu0 0.0
        %781 = vmatpush2.msra.mxu0 0.0
        %782 = vmatprep.subr.mxu0 0.0
        %783 = vmatpush2.msra.mxu0 0.0
        %784 = vmatprep.subr.mxu0 0.0
        %785 = vmatpush2.msra.mxu0 0.0
        %786 = vmatprep.subr.mxu0 0.0
        %787 = vmatpush2.msra.mxu0 0.0
        %788 = vmatprep.subr.mxu0 0.0
        %789 = vmatpush2.msra.mxu0 0.0
        %790 = vmatprep.subr.mxu0 0.0
        %791 = vmatpush2.msra.mxu0 0.0
        %792 = vmatprep.subr.mxu0 0.0
        %793 = vmatpush2.msra.mxu0 0.0
        %794 = vmatprep.mubr.f32.mxu0 0.0
        %795 = vmatmul.mubr.f32.gmra.mxu0 %v657
        %v796 = vpop.f32.mrf.mxu0
        %v797 = vadd.f32 %v653, %v796
        %v798 = vpop.f32.mrf.mxu0
        %799 = vdwg.mxu0
        %v800 = vadd.f32 %v485, %v726
        %v801 = vxor.u32 %v800, 2147483648
        %v802 = vmul.f32 %v801, 1.442695
        %v803 = vpow.pop %v802
        %v804 = vadd.f32 %v803, 1.0
        %v805 = vrcp.pop %v804
        %v806 = vmul.f32 1.0, %v805
        %v807 = vadd.f32 %v487, %v728
        %v808 = vxor.u32 %v807, 2147483648
        %v809 = vmul.f32 %v808, 1.442695
        %v810 = vpow.pop %v809
        %v811 = vadd.f32 %v810, 1.0
        %v812 = vrcp.pop %v811
        %v813 = vmul.f32 1.0, %v812
        %v814 = vmul.f32 %v806, %v797
        %v815 = vadd.f32 %v574, %v814
        %v816 = vtanh.pop %v815
        %v817 = vsub.f32 1.0, %v813
        %v818 = vmul.f32 %v817, %v816
        %v819 = vmul.f32 %v813, %v657
        %v820 = vadd.f32 %v818, %v819
        %v821 = vadd.f32 %v658, %v820
        %822 = vmatprep.subr.mxu0 %v638
        %823 = vmatpush1.msra.mxu0 %v637
        %824 = vmatprep.subr.mxu0 %v635
        %825 = vmatpush1.msra.mxu0 %v634
        %826 = vmatprep.subr.mxu0 %v632
        %827 = vmatpush1.msra.mxu0 %v631
        %828 = vmatprep.subr.mxu0 %v629
        %829 = vmatpush1.msra.mxu0 %v628
        %830 = vmatprep.subr.mxu0 %v626
        %831 = vmatpush1.msra.mxu0 %v625
        %832 = vmatprep.subr.mxu0 %v623
        %833 = vmatpush1.msra.mxu0 %v622
        %834 = vmatprep.subr.mxu0 %v620
        %835 = vmatpush1.msra.mxu0 %v619
        %836 = vmatprep.subr.mxu0 %v617
        %837 = vmatpush1.msra.mxu0 %v616
        %838 = vmatprep.subr.mxu0 %v614
        %839 = vmatpush1.msra.mxu0 %v613
        %840 = vmatprep.subr.mxu0 %v611
        %841 = vmatpush1.msra.mxu0 %v610
        %842 = vmatprep.subr.mxu0 %v608
        %843 = vmatpush1.msra.mxu0 %v607
        %844 = vmatprep.subr.mxu0 %v605
        %845 = vmatpush1.msra.mxu0 %v604
        %846 = vmatprep.subr.mxu0 %v602
        %847 = vmatpush1.msra.mxu0 %v601
        %848 = vmatprep.subr.mxu0 %v599
        %849 = vmatpush1.msra.mxu0 %v598
        %850 = vmatprep.subr.mxu0 %v596
        %851 = vmatpush1.msra.mxu0 %v595
        %852 = vmatprep.subr.mxu0 %v593
        %853 = vmatpush1.msra.mxu0 %v592
        %854 = vmatprep.subr.mxu0 0.0
        %855 = vmatpush2.msra.mxu0 0.0
        %856 = vmatprep.subr.mxu0 0.0
        %857 = vmatpush2.msra.mxu0 0.0
        %858 = vmatprep.subr.mxu0 0.0
        %859 = vmatpush2.msra.mxu0 0.0
        %860 = vmatprep.subr.mxu0 0.0
        %861 = vmatpush2.msra.mxu0 0.0
        %862 = vmatprep.subr.mxu0 0.0
        %863 = vmatpush2.msra.mxu0 0.0
        %864 = vmatprep.subr.mxu0 0.0
        %865 = vmatpush2.msra.mxu0 0.0
        %866 = vmatprep.subr.mxu0 0.0
        %867 = vmatpush2.msra.mxu0 0.0
        %868 = vmatprep.subr.mxu0 0.0
        %869 = vmatpush2.msra.mxu0 0.0
        %870 = vmatprep.subr.mxu0 0.0
        %871 = vmatpush2.msra.mxu0 0.0
        %872 = vmatprep.subr.mxu0 0.0
        %873 = vmatpush2.msra.mxu0 0.0
        %874 = vmatprep.subr.mxu0 0.0
        %875 = vmatpush2.msra.mxu0 0.0
        %876 = vmatprep.subr.mxu0 0.0
        %877 = vmatpush2.msra.mxu0 0.0
        %878 = vmatprep.subr.mxu0 0.0
        %879 = vmatpush2.msra.mxu0 0.0
        %880 = vmatprep.subr.mxu0 0.0
        %881 = vmatpush2.msra.mxu0 0.0
        %882 = vmatprep.subr.mxu0 0.0
        %883 = vmatpush2.msra.mxu0 0.0
        %884 = vmatprep.subr.mxu0 0.0
        %885 = vmatpush2.msra.mxu0 0.0
        %886 = vmatprep.mubr.f32.mxu0 0.0
        %887 = vmatmul.mubr.f32.gmra.mxu0 %v820
        %v888 = vpop.f32.mrf.mxu0
        %v889 = vadd.f32 %v645, %v888
        %v890 = vpop.f32.mrf.mxu0
        %v891 = vadd.f32 %v649, %v890
        %892 = vdwg.mxu0
        %893 = vmatprep.subr.mxu0 0.0
        %894 = vmatpush1.msra.mxu0 %v639
        %895 = vmatprep.subr.mxu0 0.0
        %896 = vmatpush1.msra.mxu0 %v636
        %897 = vmatprep.subr.mxu0 0.0
        %898 = vmatpush1.msra.mxu0 %v633
        %899 = vmatprep.subr.mxu0 0.0
        %900 = vmatpush1.msra.mxu0 %v630
        %901 = vmatprep.subr.mxu0 0.0
        %902 = vmatpush1.msra.mxu0 %v627
        %903 = vmatprep.subr.mxu0 0.0
        %904 = vmatpush1.msra.mxu0 %v624
        %905 = vmatprep.subr.mxu0 0.0
        %906 = vmatpush1.msra.mxu0 %v621
        %907 = vmatprep.subr.mxu0 0.0
        %908 = vmatpush1.msra.mxu0 %v618
        %909 = vmatprep.subr.mxu0 0.0
        %910 = vmatpush1.msra.mxu0 %v615
        %911 = vmatprep.subr.mxu0 0.0
        %912 = vmatpush1.msra.mxu0 %v612
        %913 = vmatprep.subr.mxu0 0.0
        %914 = vmatpush1.msra.mxu0 %v609
        %915 = vmatprep.subr.mxu0 0.0
        %916 = vmatpush1.msra.mxu0 %v606
        %917 = vmatprep.subr.mxu0 0.0
        %918 = vmatpush1.msra.mxu0 %v603
        %919 = vmatprep.subr.mxu0 0.0
        %920 = vmatpush1.msra.mxu0 %v600
        %921 = vmatprep.subr.mxu0 0.0
        %922 = vmatpush1.msra.mxu0 %v597
        %923 = vmatprep.subr.mxu0 0.0
        %924 = vmatpush1.msra.mxu0 %v594
        %925 = vmatprep.subr.mxu0 0.0
        %926 = vmatpush2.msra.mxu0 0.0
        %927 = vmatprep.subr.mxu0 0.0
        %928 = vmatpush2.msra.mxu0 0.0
        %929 = vmatprep.subr.mxu0 0.0
        %930 = vmatpush2.msra.mxu0 0.0
        %931 = vmatprep.subr.mxu0 0.0
        %932 = vmatpush2.msra.mxu0 0.0
        %933 = vmatprep.subr.mxu0 0.0
        %934 = vmatpush2.msra.mxu0 0.0
        %935 = vmatprep.subr.mxu0 0.0
        %936 = vmatpush2.msra.mxu0 0.0
        %937 = vmatprep.subr.mxu0 0.0
        %938 = vmatpush2.msra.mxu0 0.0
        %939 = vmatprep.subr.mxu0 0.0
        %940 = vmatpush2.msra.mxu0 0.0
        %941 = vmatprep.subr.mxu0 0.0
        %942 = vmatpush2.msra.mxu0 0.0
        %943 = vmatprep.subr.mxu0 0.0
        %944 = vmatpush2.msra.mxu0 0.0
        %945 = vmatprep.subr.mxu0 0.0
        %946 = vmatpush2.msra.mxu0 0.0
        %947 = vmatprep.subr.mxu0 0.0
        %948 = vmatpush2.msra.mxu0 0.0
        %949 = vmatprep.subr.mxu0 0.0
        %950 = vmatpush2.msra.mxu0 0.0
        %951 = vmatprep.subr.mxu0 0.0
        %952 = vmatpush2.msra.mxu0 0.0
        %953 = vmatprep.subr.mxu0 0.0
        %954 = vmatpush2.msra.mxu0 0.0
        %955 = vmatprep.subr.mxu0 0.0
        %956 = vmatpush2.msra.mxu0 0.0
        %957 = vmatprep.mubr.f32.mxu0 0.0
        %958 = vmatmul.mubr.f32.gmra.mxu0 %v820
        %v959 = vpop.f32.mrf.mxu0
        %v960 = vadd.f32 %v653, %v959
        %v961 = vpop.f32.mrf.mxu0
        %962 = vdwg.mxu0
        %v963 = vadd.f32 %v491, %v889
        %v964 = vxor.u32 %v963, 2147483648
        %v965 = vmul.f32 %v964, 1.442695
        %v966 = vpow.pop %v965
        %v967 = vadd.f32 %v966, 1.0
        %v968 = vrcp.pop %v967
        %v969 = vmul.f32 1.0, %v968
        %v970 = vadd.f32 %v493, %v891
        %v971 = vxor.u32 %v970, 2147483648
        %v972 = vmul.f32 %v971, 1.442695
        %v973 = vpow.pop %v972
        %v974 = vadd.f32 %v973, 1.0
        %v975 = vrcp.pop %v974
        %v976 = vmul.f32 1.0, %v975
        %v977 = vmul.f32 %v969, %v960
        %v978 = vadd.f32 %v579, %v977
        %v979 = vtanh.pop %v978
        %v980 = vsub.f32 1.0, %v976
        %v981 = vmul.f32 %v980, %v979
        %v982 = vmul.f32 %v976, %v820
        %v983 = vadd.f32 %v981, %v982
        %v984 = vadd.f32 %v821, %v983
        %985 = vmatprep.subr.mxu0 %v638
        %986 = vmatpush1.msra.mxu0 %v637
        %987 = vmatprep.subr.mxu0 %v635
        %988 = vmatpush1.msra.mxu0 %v634
        %989 = vmatprep.subr.mxu0 %v632
        %990 = vmatpush1.msra.mxu0 %v631
        %991 = vmatprep.subr.mxu0 %v629
        %992 = vmatpush1.msra.mxu0 %v628
        %993 = vmatprep.subr.mxu0 %v626
        %994 = vmatpush1.msra.mxu0 %v625
        %995 = vmatprep.subr.mxu0 %v623
        %996 = vmatpush1.msra.mxu0 %v622
        %997 = vmatprep.subr.mxu0 %v620
        %998 = vmatpush1.msra.mxu0 %v619
        %999 = vmatprep.subr.mxu0 %v617
        %1000 = vmatpush1.msra.mxu0 %v616
        %1001 = vmatprep.subr.mxu0 %v614
        %1002 = vmatpush1.msra.mxu0 %v613
        %1003 = vmatprep.subr.mxu0 %v611
        %1004 = vmatpush1.msra.mxu0 %v610
        %1005 = vmatprep.subr.mxu0 %v608
        %1006 = vmatpush1.msra.mxu0 %v607
        %1007 = vmatprep.subr.mxu0 %v605
        %1008 = vmatpush1.msra.mxu0 %v604
        %1009 = vmatprep.subr.mxu0 %v602
        %1010 = vmatpush1.msra.mxu0 %v601
        %1011 = vmatprep.subr.mxu0 %v599
        %1012 = vmatpush1.msra.mxu0 %v598
        %1013 = vmatprep.subr.mxu0 %v596
        %1014 = vmatpush1.msra.mxu0 %v595
        %1015 = vmatprep.subr.mxu0 %v593
        %1016 = vmatpush1.msra.mxu0 %v592
        %1017 = vmatprep.subr.mxu0 0.0
        %1018 = vmatpush2.msra.mxu0 0.0
        %1019 = vmatprep.subr.mxu0 0.0
        %1020 = vmatpush2.msra.mxu0 0.0
        %1021 = vmatprep.subr.mxu0 0.0
        %1022 = vmatpush2.msra.mxu0 0.0
        %1023 = vmatprep.subr.mxu0 0.0
        %1024 = vmatpush2.msra.mxu0 0.0
        %1025 = vmatprep.subr.mxu0 0.0
        %1026 = vmatpush2.msra.mxu0 0.0
        %1027 = vmatprep.subr.mxu0 0.0
        %1028 = vmatpush2.msra.mxu0 0.0
        %1029 = vmatprep.subr.mxu0 0.0
        %1030 = vmatpush2.msra.mxu0 0.0
        %1031 = vmatprep.subr.mxu0 0.0
        %1032 = vmatpush2.msra.mxu0 0.0
        %1033 = vmatprep.subr.mxu0 0.0
        %1034 = vmatpush2.msra.mxu0 0.0
        %1035 = vmatprep.subr.mxu0 0.0
        %1036 = vmatpush2.msra.mxu0 0.0
        %1037 = vmatprep.subr.mxu0 0.0
        %1038 = vmatpush2.msra.mxu0 0.0
        %1039 = vmatprep.subr.mxu0 0.0
        %1040 = vmatpush2.msra.mxu0 0.0
        %1041 = vmatprep.subr.mxu0 0.0
        %1042 = vmatpush2.msra.mxu0 0.0
        %1043 = vmatprep.subr.mxu0 0.0
        %1044 = vmatpush2.msra.mxu0 0.0
        %1045 = vmatprep.subr.mxu0 0.0
        %1046 = vmatpush2.msra.mxu0 0.0
        %1047 = vmatprep.subr.mxu0 0.0
        %1048 = vmatpush2.msra.mxu0 0.0
        %1049 = vmatprep.mubr.f32.mxu0 0.0
        %1050 = vmatmul.mubr.f32.gmra.mxu0 %v983
        %v1051 = vpop.f32.mrf.mxu0
        %v1052 = vadd.f32 %v645, %v1051
        %v1053 = vpop.f32.mrf.mxu0
        %v1054 = vadd.f32 %v649, %v1053
        %1055 = vdwg.mxu0
        %1056 = vmatprep.subr.mxu0 0.0
        %1057 = vmatpush1.msra.mxu0 %v639
        %1058 = vmatprep.subr.mxu0 0.0
        %1059 = vmatpush1.msra.mxu0 %v636
        %1060 = vmatprep.subr.mxu0 0.0
        %1061 = vmatpush1.msra.mxu0 %v633
        %1062 = vmatprep.subr.mxu0 0.0
        %1063 = vmatpush1.msra.mxu0 %v630
        %1064 = vmatprep.subr.mxu0 0.0
        %1065 = vmatpush1.msra.mxu0 %v627
        %1066 = vmatprep.subr.mxu0 0.0
        %1067 = vmatpush1.msra.mxu0 %v624
        %1068 = vmatprep.subr.mxu0 0.0
        %1069 = vmatpush1.msra.mxu0 %v621
        %1070 = vmatprep.subr.mxu0 0.0
        %1071 = vmatpush1.msra.mxu0 %v618
        %1072 = vmatprep.subr.mxu0 0.0
        %1073 = vmatpush1.msra.mxu0 %v615
        %1074 = vmatprep.subr.mxu0 0.0
        %1075 = vmatpush1.msra.mxu0 %v612
        %1076 = vmatprep.subr.mxu0 0.0
        %1077 = vmatpush1.msra.mxu0 %v609
        %1078 = vmatprep.subr.mxu0 0.0
        %1079 = vmatpush1.msra.mxu0 %v606
        %1080 = vmatprep.subr.mxu0 0.0
        %1081 = vmatpush1.msra.mxu0 %v603
        %1082 = vmatprep.subr.mxu0 0.0
        %1083 = vmatpush1.msra.mxu0 %v600
        %1084 = vmatprep.subr.mxu0 0.0
        %1085 = vmatpush1.msra.mxu0 %v597
        %1086 = vmatprep.subr.mxu0 0.0
        %1087 = vmatpush1.msra.mxu0 %v594
        %1088 = vmatprep.subr.mxu0 0.0
        %1089 = vmatpush2.msra.mxu0 0.0
        %1090 = vmatprep.subr.mxu0 0.0
        %1091 = vmatpush2.msra.mxu0 0.0
        %1092 = vmatprep.subr.mxu0 0.0
        %1093 = vmatpush2.msra.mxu0 0.0
        %1094 = vmatprep.subr.mxu0 0.0
        %1095 = vmatpush2.msra.mxu0 0.0
        %1096 = vmatprep.subr.mxu0 0.0
        %1097 = vmatpush2.msra.mxu0 0.0
        %1098 = vmatprep.subr.mxu0 0.0
        %1099 = vmatpush2.msra.mxu0 0.0
        %1100 = vmatprep.subr.mxu0 0.0
        %1101 = vmatpush2.msra.mxu0 0.0
        %1102 = vmatprep.subr.mxu0 0.0
        %1103 = vmatpush2.msra.mxu0 0.0
        %1104 = vmatprep.subr.mxu0 0.0
        %1105 = vmatpush2.msra.mxu0 0.0
        %1106 = vmatprep.subr.mxu0 0.0
        %1107 = vmatpush2.msra.mxu0 0.0
        %1108 = vmatprep.subr.mxu0 0.0
        %1109 = vmatpush2.msra.mxu0 0.0
        %1110 = vmatprep.subr.mxu0 0.0
        %1111 = vmatpush2.msra.mxu0 0.0
        %1112 = vmatprep.subr.mxu0 0.0
        %1113 = vmatpush2.msra.mxu0 0.0
        %1114 = vmatprep.subr.mxu0 0.0
        %1115 = vmatpush2.msra.mxu0 0.0
        %1116 = vmatprep.subr.mxu0 0.0
        %1117 = vmatpush2.msra.mxu0 0.0
        %1118 = vmatprep.subr.mxu0 0.0
        %1119 = vmatpush2.msra.mxu0 0.0
        %1120 = vmatprep.mubr.f32.mxu0 0.0
        %1121 = vmatmul.mubr.f32.gmra.mxu0 %v983
        %v1122 = vpop.f32.mrf.mxu0
        %v1123 = vadd.f32 %v653, %v1122
        %v1124 = vpop.f32.mrf.mxu0
        %1125 = vdwg.mxu0
        %v1126 = vadd.f32 %v497, %v1052
        %v1127 = vxor.u32 %v1126, 2147483648
        %v1128 = vmul.f32 %v1127, 1.442695
        %v1129 = vpow.pop %v1128
        %v1130 = vadd.f32 %v1129, 1.0
        %v1131 = vrcp.pop %v1130
        %v1132 = vmul.f32 1.0, %v1131
        %v1133 = vadd.f32 %v499, %v1054
        %v1134 = vxor.u32 %v1133, 2147483648
        %v1135 = vmul.f32 %v1134, 1.442695
        %v1136 = vpow.pop %v1135
        %v1137 = vadd.f32 %v1136, 1.0
        %v1138 = vrcp.pop %v1137
        %v1139 = vmul.f32 1.0, %v1138
        %v1140 = vmul.f32 %v1132, %v1123
        %v1141 = vadd.f32 %v584, %v1140
        %v1142 = vtanh.pop %v1141
        %v1143 = vsub.f32 1.0, %v1139
        %v1144 = vmul.f32 %v1143, %v1142
        %v1145 = vmul.f32 %v1139, %v983
        %v1146 = vadd.f32 %v1144, %v1145
        %v1147 = vadd.f32 %v984, %v1146
        %1148 = vmatprep.subr.mxu0 %v638
        %1149 = vmatpush1.msra.mxu0 %v637
        %1150 = vmatprep.subr.mxu0 %v635
        %1151 = vmatpush1.msra.mxu0 %v634
        %1152 = vmatprep.subr.mxu0 %v632
        %1153 = vmatpush1.msra.mxu0 %v631
        %1154 = vmatprep.subr.mxu0 %v629
        %1155 = vmatpush1.msra.mxu0 %v628
        %1156 = vmatprep.subr.mxu0 %v626
        %1157 = vmatpush1.msra.mxu0 %v625
        %1158 = vmatprep.subr.mxu0 %v623
        %1159 = vmatpush1.msra.mxu0 %v622
        %1160 = vmatprep.subr.mxu0 %v620
        %1161 = vmatpush1.msra.mxu0 %v619
        %1162 = vmatprep.subr.mxu0 %v617
        %1163 = vmatpush1.msra.mxu0 %v616
        %1164 = vmatprep.subr.mxu0 %v614
        %1165 = vmatpush1.msra.mxu0 %v613
        %1166 = vmatprep.subr.mxu0 %v611
        %1167 = vmatpush1.msra.mxu0 %v610
        %1168 = vmatprep.subr.mxu0 %v608
        %1169 = vmatpush1.msra.mxu0 %v607
        %1170 = vmatprep.subr.mxu0 %v605
        %1171 = vmatpush1.msra.mxu0 %v604
        %1172 = vmatprep.subr.mxu0 %v602
        %1173 = vmatpush1.msra.mxu0 %v601
        %1174 = vmatprep.subr.mxu0 %v599
        %1175 = vmatpush1.msra.mxu0 %v598
        %1176 = vmatprep.subr.mxu0 %v596
        %1177 = vmatpush1.msra.mxu0 %v595
        %1178 = vmatprep.subr.mxu0 %v593
        %1179 = vmatpush1.msra.mxu0 %v592
        %1180 = vmatprep.subr.mxu0 0.0
        %1181 = vmatpush2.msra.mxu0 0.0
        %1182 = vmatprep.subr.mxu0 0.0
        %1183 = vmatpush2.msra.mxu0 0.0
        %1184 = vmatprep.subr.mxu0 0.0
        %1185 = vmatpush2.msra.mxu0 0.0
        %1186 = vmatprep.subr.mxu0 0.0
        %1187 = vmatpush2.msra.mxu0 0.0
        %1188 = vmatprep.subr.mxu0 0.0
        %1189 = vmatpush2.msra.mxu0 0.0
        %1190 = vmatprep.subr.mxu0 0.0
        %1191 = vmatpush2.msra.mxu0 0.0
        %1192 = vmatprep.subr.mxu0 0.0
        %1193 = vmatpush2.msra.mxu0 0.0
        %1194 = vmatprep.subr.mxu0 0.0
        %1195 = vmatpush2.msra.mxu0 0.0
        %1196 = vmatprep.subr.mxu0 0.0
        %1197 = vmatpush2.msra.mxu0 0.0
        %1198 = vmatprep.subr.mxu0 0.0
        %1199 = vmatpush2.msra.mxu0 0.0
        %1200 = vmatprep.subr.mxu0 0.0
        %1201 = vmatpush2.msra.mxu0 0.0
        %1202 = vmatprep.subr.mxu0 0.0
        %1203 = vmatpush2.msra.mxu0 0.0
        %1204 = vmatprep.subr.mxu0 0.0
        %1205 = vmatpush2.msra.mxu0 0.0
        %1206 = vmatprep.subr.mxu0 0.0
        %1207 = vmatpush2.msra.mxu0 0.0
        %1208 = vmatprep.subr.mxu0 0.0
        %1209 = vmatpush2.msra.mxu0 0.0
        %1210 = vmatprep.subr.mxu0 0.0
        %1211 = vmatpush2.msra.mxu0 0.0
        %1212 = vmatprep.mubr.f32.mxu0 0.0
        %1213 = vmatmul.mubr.f32.gmra.mxu0 %v1146
        %v1214 = vpop.f32.mrf.mxu0
        %v1215 = vadd.f32 %v645, %v1214
        %v1216 = vpop.f32.mrf.mxu0
        %v1217 = vadd.f32 %v649, %v1216
        %1218 = vdwg.mxu0
        %1219 = vmatprep.subr.mxu0 0.0
        %1220 = vmatpush1.msra.mxu0 %v639
        %1221 = vmatprep.subr.mxu0 0.0
        %1222 = vmatpush1.msra.mxu0 %v636
        %1223 = vmatprep.subr.mxu0 0.0
        %1224 = vmatpush1.msra.mxu0 %v633
        %1225 = vmatprep.subr.mxu0 0.0
        %1226 = vmatpush1.msra.mxu0 %v630
        %1227 = vmatprep.subr.mxu0 0.0
        %1228 = vmatpush1.msra.mxu0 %v627
        %1229 = vmatprep.subr.mxu0 0.0
        %1230 = vmatpush1.msra.mxu0 %v624
        %1231 = vmatprep.subr.mxu0 0.0
        %1232 = vmatpush1.msra.mxu0 %v621
        %1233 = vmatprep.subr.mxu0 0.0
        %1234 = vmatpush1.msra.mxu0 %v618
        %1235 = vmatprep.subr.mxu0 0.0
        %1236 = vmatpush1.msra.mxu0 %v615
        %1237 = vmatprep.subr.mxu0 0.0
        %1238 = vmatpush1.msra.mxu0 %v612
        %1239 = vmatprep.subr.mxu0 0.0
        %1240 = vmatpush1.msra.mxu0 %v609
        %1241 = vmatprep.subr.mxu0 0.0
        %1242 = vmatpush1.msra.mxu0 %v606
        %1243 = vmatprep.subr.mxu0 0.0
        %1244 = vmatpush1.msra.mxu0 %v603
        %1245 = vmatprep.subr.mxu0 0.0
        %1246 = vmatpush1.msra.mxu0 %v600
        %1247 = vmatprep.subr.mxu0 0.0
        %1248 = vmatpush1.msra.mxu0 %v597
        %1249 = vmatprep.subr.mxu0 0.0
        %1250 = vmatpush1.msra.mxu0 %v594
        %1251 = vmatprep.subr.mxu0 0.0
        %1252 = vmatpush2.msra.mxu0 0.0
        %1253 = vmatprep.subr.mxu0 0.0
        %1254 = vmatpush2.msra.mxu0 0.0
        %1255 = vmatprep.subr.mxu0 0.0
        %1256 = vmatpush2.msra.mxu0 0.0
        %1257 = vmatprep.subr.mxu0 0.0
        %1258 = vmatpush2.msra.mxu0 0.0
        %1259 = vmatprep.subr.mxu0 0.0
        %1260 = vmatpush2.msra.mxu0 0.0
        %1261 = vmatprep.subr.mxu0 0.0
        %1262 = vmatpush2.msra.mxu0 0.0
        %1263 = vmatprep.subr.mxu0 0.0
        %1264 = vmatpush2.msra.mxu0 0.0
        %1265 = vmatprep.subr.mxu0 0.0
        %1266 = vmatpush2.msra.mxu0 0.0
        %1267 = vmatprep.subr.mxu0 0.0
        %1268 = vmatpush2.msra.mxu0 0.0
        %1269 = vmatprep.subr.mxu0 0.0
        %1270 = vmatpush2.msra.mxu0 0.0
        %1271 = vmatprep.subr.mxu0 0.0
        %1272 = vmatpush2.msra.mxu0 0.0
        %1273 = vmatprep.subr.mxu0 0.0
        %1274 = vmatpush2.msra.mxu0 0.0
        %1275 = vmatprep.subr.mxu0 0.0
        %1276 = vmatpush2.msra.mxu0 0.0
        %1277 = vmatprep.subr.mxu0 0.0
        %1278 = vmatpush2.msra.mxu0 0.0
        %1279 = vmatprep.subr.mxu0 0.0
        %1280 = vmatpush2.msra.mxu0 0.0
        %1281 = vmatprep.subr.mxu0 0.0
        %1282 = vmatpush2.msra.mxu0 0.0
        %1283 = vmatprep.mubr.f32.mxu0 0.0
        %1284 = vmatmul.mubr.f32.gmra.mxu0 %v1146
        %v1285 = vpop.f32.mrf.mxu0
        %v1286 = vadd.f32 %v653, %v1285
        %v1287 = vpop.f32.mrf.mxu0
        %1288 = vdwg.mxu0
        %v1289 = vadd.f32 %v503, %v1215
        %v1290 = vxor.u32 %v1289, 2147483648
        %v1291 = vmul.f32 %v1290, 1.442695
        %v1292 = vpow.pop %v1291
        %v1293 = vadd.f32 %v1292, 1.0
        %v1294 = vrcp.pop %v1293
        %v1295 = vmul.f32 1.0, %v1294
        %v1296 = vadd.f32 %v505, %v1217
        %v1297 = vxor.u32 %v1296, 2147483648
        %v1298 = vmul.f32 %v1297, 1.442695
        %v1299 = vpow.pop %v1298
        %v1300 = vadd.f32 %v1299, 1.0
        %v1301 = vrcp.pop %v1300
        %v1302 = vmul.f32 1.0, %v1301
        %v1303 = vmul.f32 %v1295, %v1286
        %v1304 = vadd.f32 %v589, %v1303
        %v1305 = vtanh.pop %v1304
        %v1306 = vsub.f32 1.0, %v1302
        %v1307 = vmul.f32 %v1306, %v1305
        %v1308 = vmul.f32 %v1302, %v1146
        %v1309 = vadd.f32 %v1307, %v1308
        %v1310 = vadd.f32 %v1147, %v1309
        %1311 = vst [vmem:[#allocation2] sm:$0xff] %v1309
        %1312 = vst [vmem:[#allocation3] sm:$0xff] %v1310
        %p1313 = scmp.eq.s32.totalorder %s29, 1
        // Predicated region
        $region69: #{tpu_custom_call.1} parent=47 // pred_check
          %p1314 = pneg %p1313
        $region70: #{tpu_custom_call.1} parent=47 // pred_check_branch
          %1316 = sbr.rel (%p1314) target = $region72
        $region71: #{tpu_custom_call.1} parent=47 // pred_region
          %v1317 = vmul.f32 %v1310, 0.125
          %v1318 = vld [vmem:[#allocation10] sm:$0xff]
          %v1319 = vld [vmem:[#allocation10 + $0x8] sm:$0xff]
          %v1320 = vld [vmem:[#allocation10 + $0x10] sm:$0xff]
          %v1321 = vld [vmem:[#allocation10 + $0x18] sm:$0xff]
          %v1322 = vld [vmem:[#allocation10 + $0x20] sm:$0xff]
          %v1323 = vld [vmem:[#allocation10 + $0x28] sm:$0xff]
          %v1324 = vld [vmem:[#allocation10 + $0x30] sm:$0xff]
          %v1325 = vld [vmem:[#allocation10 + $0x38] sm:$0xff]
          %v1326 = vld [vmem:[#allocation10 + $0x40] sm:$0xff]
          %v1327 = vld [vmem:[#allocation10 + $0x48] sm:$0xff]
          %v1328 = vld [vmem:[#allocation10 + $0x50] sm:$0xff]
          %v1329 = vld [vmem:[#allocation10 + $0x58] sm:$0xff]
          %v1330 = vld [vmem:[#allocation10 + $0x60] sm:$0xff]
          %v1331 = vld [vmem:[#allocation10 + $0x68] sm:$0xff]
          %v1332 = vld [vmem:[#allocation10 + $0x70] sm:$0xff]
          %v1333 = vld [vmem:[#allocation10 + $0x78] sm:$0xff]
          %v1334 = vld [vmem:[%s6] sm:$0x1]
          %v1336 = vlaneseq
          %v1337 = vshrl.u32 %v1336, 7
          %v1338 = vsub.s32 0, %v1337
          %v1339 = vrot.slane %v1334, %v1338
          %1341 = vmatprep.subr.mxu0 0.0
          %1342 = vmatpush1.msra.mxu0 %v1333
          %1343 = vmatprep.subr.mxu0 0.0
          %1344 = vmatpush1.msra.mxu0 %v1332
          %1345 = vmatprep.subr.mxu0 0.0
          %1346 = vmatpush1.msra.mxu0 %v1331
          %1347 = vmatprep.subr.mxu0 0.0
          %1348 = vmatpush1.msra.mxu0 %v1330
          %1349 = vmatprep.subr.mxu0 0.0
          %1350 = vmatpush1.msra.mxu0 %v1329
          %1351 = vmatprep.subr.mxu0 0.0
          %1352 = vmatpush1.msra.mxu0 %v1328
          %1353 = vmatprep.subr.mxu0 0.0
          %1354 = vmatpush1.msra.mxu0 %v1327
          %1355 = vmatprep.subr.mxu0 0.0
          %1356 = vmatpush1.msra.mxu0 %v1326
          %1357 = vmatprep.subr.mxu0 0.0
          %1358 = vmatpush1.msra.mxu0 %v1325
          %1359 = vmatprep.subr.mxu0 0.0
          %1360 = vmatpush1.msra.mxu0 %v1324
          %1361 = vmatprep.subr.mxu0 0.0
          %1362 = vmatpush1.msra.mxu0 %v1323
          %1363 = vmatprep.subr.mxu0 0.0
          %1364 = vmatpush1.msra.mxu0 %v1322
          %1365 = vmatprep.subr.mxu0 0.0
          %1366 = vmatpush1.msra.mxu0 %v1321
          %1367 = vmatprep.subr.mxu0 0.0
          %1368 = vmatpush1.msra.mxu0 %v1320
          %1369 = vmatprep.subr.mxu0 0.0
          %1370 = vmatpush1.msra.mxu0 %v1319
          %1371 = vmatprep.subr.mxu0 0.0
          %1372 = vmatpush1.msra.mxu0 %v1318
          %1373 = vmatprep.subr.mxu0 0.0
          %1374 = vmatpush2.msra.mxu0 0.0
          %1375 = vmatprep.subr.mxu0 0.0
          %1376 = vmatpush2.msra.mxu0 0.0
          %1377 = vmatprep.subr.mxu0 0.0
          %1378 = vmatpush2.msra.mxu0 0.0
          %1379 = vmatprep.subr.mxu0 0.0
          %1380 = vmatpush2.msra.mxu0 0.0
          %1381 = vmatprep.subr.mxu0 0.0
          %1382 = vmatpush2.msra.mxu0 0.0
          %1383 = vmatprep.subr.mxu0 0.0
          %1384 = vmatpush2.msra.mxu0 0.0
          %1385 = vmatprep.subr.mxu0 0.0
          %1386 = vmatpush2.msra.mxu0 0.0
          %1387 = vmatprep.subr.mxu0 0.0
          %1388 = vmatpush2.msra.mxu0 0.0
          %1389 = vmatprep.subr.mxu0 0.0
          %1390 = vmatpush2.msra.mxu0 0.0
          %1391 = vmatprep.subr.mxu0 0.0
          %1392 = vmatpush2.msra.mxu0 0.0
          %1393 = vmatprep.subr.mxu0 0.0
          %1394 = vmatpush2.msra.mxu0 0.0
          %1395 = vmatprep.subr.mxu0 0.0
          %1396 = vmatpush2.msra.mxu0 0.0
          %1397 = vmatprep.subr.mxu0 0.0
          %1398 = vmatpush2.msra.mxu0 0.0
          %1399 = vmatprep.subr.mxu0 0.0
          %1400 = vmatpush2.msra.mxu0 0.0
          %1401 = vmatprep.subr.mxu0 0.0
          %1402 = vmatpush2.msra.mxu0 0.0
          %1403 = vmatprep.subr.mxu0 0.0
          %1404 = vmatpush2.msra.mxu0 0.0
          %1405 = vmatprep.mubr.f32.mxu0 0.0
          %1406 = vmatmul.mubr.f32.gmra.mxu0 %v1317
          %v1407 = vpop.f32.mrf.mxu0
          %v1408 = vadd.f32 %v1339, %v1407
          %v1409 = vpop.f32.mrf.mxu0
          %1410 = vdwg.mxu0
          %1411 = vst [vmem:[#allocation12] sm:$0xff] %v1408
        $region72: #{tpu_custom_call.1} parent=47 // pred_fallthru
          _
        // Predicated region
        $region73: #{tpu_custom_call.1} parent=47 // pred_check
          %p1412 = pneg %p208
        $region74: #{tpu_custom_call.1} parent=47 // pred_check_branch
          %1414 = sbr.rel (%p1412) target = $region76
        $region75: #{tpu_custom_call.1} parent=47 // pred_region
          %s1416 = ssub.s32 128, 128
          %1417 = vsyncadd [#allocation6], %s1416
          %s1418 = smul.addr %s28, 128
          %s1419 = scalar_lea.hbm %s7, %s1418
          %s1421 = sshll.u32 [#allocation12], 4
          %s1422 = int_to_ptr.vmem [resolvable:$true] %s1421
          %1424 = dma.vmem_to_hbm [thread:$0]  %s1422, 128, %s1419, [#allocation6]
        $region76: #{tpu_custom_call.1} parent=47 // pred_fallthru
          _
        // Predicated region
        $region77: #{tpu_custom_call.1} parent=47 // pred_check
          %p1425 = pneg %p208
        $region78: #{tpu_custom_call.1} parent=47 // pred_check_branch
          %1427 = sbr.rel (%p1425) target = $region80
        $region79: #{tpu_custom_call.1} parent=47 // pred_region
          %1428 = dma.done [#allocation6], 128
        $region80: #{tpu_custom_call.1} parent=47 // pred_fallthru
          _
      $region48: #{tpu_custom_call.1} parent=5 // pred_fallthru
        _
      %p1429 = scmp.le.s32.totalorder 2, %s19
      // Predicated region
      $region81: #{tpu_custom_call.1} parent=5 // pred_check
        %p1430 = pneg %p1429
      $region82: #{tpu_custom_call.1} parent=5 // pred_check_branch
        %1432 = sbr.rel (%p1430) target = $region84
      $region83: #{tpu_custom_call.1} parent=5 // pred_region
        %s1433 = ssub.s32 %s19, 2
      $region84: #{tpu_custom_call.1} parent=5 // pred_fallthru
        _
    $region6: #{tpu_custom_call.1} parent=1 // loop_footer
      %s23 = sadd.s32 1, %s19
    $region7: #{tpu_custom_call.1} parent=1 // loop_footer_branch
      %18 = sbr.rel target = $region3
    $region8: #{tpu_custom_call.1} parent=1 // loop_exit
      _
    %1434 = vsyncpa [#allocation5], 1
    %s1435 = scalar_lea.sflag [#allocation5], 1
    %1436 = vsyncpa %s1435, 1
    %1437 = vsyncpa [#allocation8], 1
    %1438 = vsyncpa [#allocation11], 1
    %1439 = vsyncpa [#allocation6], 1
    %s1440 = scalar_lea.sflag [#allocation6], 1
    %1441 = vsyncpa %s1440, 1

</llo_original>
